<compile_context>
chip_gen: v7x
topology: tpu7x:2x2x1
jax: 0.10.0
libtpu: 0.0.40
codegen_flags: <defaults>
</compile_context>

<pallas_src>
import jax
import jax.numpy as jnp
from jax.experimental import pallas as pl
from jax.experimental.pallas import tpu as pltpu


def _nonlocal_kernel(x_ref, w_proj_ref, b_proj_ref, w_ext_ref, b_ext_ref,
                     o_ref, th_scr, phi_scr, g_scr):
    """Fused NonLocal forward.  Grid = (batch, quadrant/query-tile).

    x_ref  : (4, HWp, Cin)  the 4 quadrants of every 2x2 pooling window (bf16),
                            pooled positions flattened hp*Wp+wp, channels last.
    o_ref  : (1, HWp, Cin)  output rows for the current quadrant.
    th_scr : (4, HWp, Crp)  per-quadrant theta (1/HWp already folded in).
    phi_scr/g_scr : (HWp, Crp) max-pooled phi / g, shared by all quadrants.
    """
    n_quad, hwp, _ = x_ref.shape
    crp = w_ext_ref.shape[0]
    cdtype = x_ref.dtype
    q = pl.program_id(1)

    # ---- once per batch element: fused projection + fused 2x2 max-pool --------
    # MaxPool2x2(Conv1x1(x)) == elementwise max over the 4 quadrant projections.
    @pl.when(q == 0)
    def _():
        w_proj = w_proj_ref[...]                                    # (Cin, 3*Crp)
        b_proj = jnp.broadcast_to(b_proj_ref[...], (hwp, 3 * crp))  # hoisted once
        for qq in range(n_quad):
            proj = jnp.dot(x_ref[qq], w_proj,
                           preferred_element_type=jnp.float32) + b_proj
            proj = proj.astype(cdtype)                              # (HWp, 3*Crp)
            th = proj[:, 0:crp]
            ph = proj[:, crp:2 * crp]
            gg = proj[:, 2 * crp:3 * crp]
            th_scr[qq] = th
            if qq == 0:
                phi_scr[...] = ph
                g_scr[...] = gg
            else:
                phi_scr[...] = jnp.maximum(phi_scr[...], ph)
                g_scr[...] = jnp.maximum(g_scr[...], gg)

    # ---- per quadrant (query tile): similarity, aggregation, extend -----------
    th_q = th_scr[q]                                                # (HWp, Crp) bf16
    # S[n, m] = sum_k theta_scaled[n, k] * phy[m, k]   (1/HWp folded into theta)
    s_q = jax.lax.dot_general(
        th_q, phi_scr[...],
        dimension_numbers=(((1,), (1,)), ((), ())),
        preferred_element_type=jnp.float32)                         # (HWp, HWp) f32
    att = jnp.dot(s_q.astype(cdtype), g_scr[...],
                  preferred_element_type=jnp.float32)               # (HWp, Crp) f32
    y = jnp.dot(att.astype(cdtype), w_ext_ref[...],
                preferred_element_type=jnp.float32) + b_ext_ref[...]  # BN folded in
    o_ref[0] = y.astype(o_ref.dtype)


def non_local_forward(x_nchw, w_theta, b_theta, w_phy, b_phy, w_g, b_g,
                      w_ext, b_ext, bn_gamma, bn_beta, bn_mean, bn_var,
                      bn_eps=1e-5, compute_dtype=jnp.bfloat16, lane=128):
    """NonLocal(subsample=True, use_bn=True) forward.  Weights are (Cin, Cout)."""
    B, Cin, H, W = x_nchw.shape
    assert H % 2 == 0 and W % 2 == 0, "2x2 max-pool requires even spatial dims"
    Hp, Wp = H // 2, W // 2
    HWp = Hp * Wp
    Cr = w_theta.shape[1]
    n_quad = 4
    out_dtype = x_nchw.dtype
    f32 = jnp.float32

    # ---- constant folding (weights only, free) --------------------------------
    # 1/HWp normalisation of the similarity matrix -> theta weights/bias.
    w_theta_f = w_theta.astype(f32) / HWp
    b_theta_f = b_theta.astype(f32) / HWp
    # Eval-mode BatchNorm -> extend conv.
    # TODO(synk): training-mode SyncBatchNorm (cross-device batch statistics) not implemented.
    bn_scale = bn_gamma.astype(f32) * jax.lax.rsqrt(bn_var.astype(f32) + bn_eps)
    w_ext_f = w_ext.astype(f32) * bn_scale[None, :]
    b_ext_f = b_ext.astype(f32) * bn_scale + (bn_beta.astype(f32) - bn_mean.astype(f32) * bn_scale)

    # ---- lane-dense padding of the reduced channel dim (zero pad -> exact) ----
    Crp = ((Cr + lane - 1) // lane) * lane

    def pad_cols(w, b):
        return (jnp.pad(w.astype(f32), ((0, 0), (0, Crp - Cr))),
                jnp.pad(b.astype(f32), ((0, Crp - Cr),)))

    w_th_p, b_th_p = pad_cols(w_theta_f, b_theta_f)
    w_ph_p, b_ph_p = pad_cols(w_phy, b_phy)
    w_g_p, b_g_p = pad_cols(w_g, b_g)
    w_ext_p = jnp.pad(w_ext_f, ((0, Crp - Cr), (0, 0)))

    # Fused (Cin, 3*Crp) projection weight [theta | phi | g] -> one matmul/quadrant.
    w_proj = jnp.concatenate([w_th_p, w_ph_p, w_g_p], axis=1).astype(compute_dtype)
    b_proj = jnp.concatenate([b_th_p, b_ph_p, b_g_p]).reshape(1, 3 * Crp).astype(f32)
    w_ext_c = w_ext_p.astype(compute_dtype)
    b_ext_c = b_ext_f.reshape(1, Cin).astype(f32)

    # ---- layout plumbing only: NCHW -> (B*4, HWp, Cin), 2x2-quadrant grouped --
    x_nhwc = jnp.transpose(x_nchw, (0, 2, 3, 1)).astype(compute_dtype)
    xq = x_nhwc.reshape(B, Hp, 2, Wp, 2, Cin)
    xq = jnp.transpose(xq, (0, 2, 4, 1, 3, 5)).reshape(B * n_quad, HWp, Cin)

    # ---- explicit VMEM budget --------------------------------------------------
    csz = jnp.dtype(compute_dtype).itemsize
    vmem = 2 * (n_quad * HWp * Cin * csz)             # x block (double buffered)
    vmem += 2 * (HWp * Cin * csz)                     # out block
    vmem += 2 * (Cin * 3 * Crp * csz + 3 * Crp * 4)   # fused projection weight + bias
    vmem += 2 * (Crp * Cin * csz + Cin * 4)           # extend weight + bias
    vmem += (n_quad + 2) * HWp * Crp * csz            # theta / phi / g scratch
    vmem += HWp * HWp * 4 + 2 * HWp * Crp * 4 + HWp * Cin * 4 + HWp * 3 * Crp * 4
    vmem_limit = int(min(max(2 * vmem, 32 * 1024 * 1024), 100 * 1024 * 1024))

    yq = pl.pallas_call(
        _nonlocal_kernel,
        out_shape=jax.ShapeDtypeStruct((B * n_quad, HWp, Cin), compute_dtype),
        grid_spec=pltpu.PrefetchScalarGridSpec(
            num_scalar_prefetch=0,
            grid=(B, n_quad),
            in_specs=[
                pl.BlockSpec((n_quad, HWp, Cin), lambda b, q: (b, 0, 0)),   # x (resident per batch)
                pl.BlockSpec((Cin, 3 * Crp), lambda b, q: (0, 0)),          # fused proj weight
                pl.BlockSpec((1, 3 * Crp), lambda b, q: (0, 0)),            # fused proj bias
                pl.BlockSpec((Crp, Cin), lambda b, q: (0, 0)),              # extend weight (BN folded)
                pl.BlockSpec((1, Cin), lambda b, q: (0, 0)),                # extend bias (BN folded)
            ],
            out_specs=pl.BlockSpec((1, HWp, Cin),
                                   lambda b, q: (n_quad * b + q, 0, 0)),
            scratch_shapes=[
                pltpu.VMEM((n_quad, HWp, Crp), compute_dtype),   # theta per quadrant
                pltpu.VMEM((HWp, Crp), compute_dtype),           # phi (max-pooled)
                pltpu.VMEM((HWp, Crp), compute_dtype),           # g   (max-pooled)
            ],
        ),
        compiler_params=pltpu.CompilerParams(
            dimension_semantics=("parallel", "arbitrary"),
            vmem_limit_bytes=vmem_limit,
        ),
    )(xq, w_proj, b_proj, w_ext_c, b_ext_c)

    # Undo the quadrant grouping: back to NCHW.
    y = yq.reshape(B, 2, 2, Hp, Wp, Cin)
    y = jnp.transpose(y, (0, 3, 1, 4, 2, 5)).reshape(B, H, W, Cin)
    return jnp.transpose(y, (0, 3, 1, 2)).astype(out_dtype)


def non_local_reference(x, w_theta, b_theta, w_phy, b_phy, w_g, b_g,
                        w_ext, b_ext, bn_gamma, bn_beta, bn_mean, bn_var,
                        bn_eps=1e-5):
    """Plain-JAX f32 mirror of the PyTorch forward (NCHW), for correctness check."""
    B, Cin, H, W = x.shape
    Cr = w_theta.shape[1]
    hp = jax.lax.Precision.HIGHEST

    def conv1x1(v, w, b):
        return jnp.einsum('bchw,cd->bdhw', v, w, precision=hp) + b[None, :, None, None]

    def maxpool2x2(v):
        Bv, Cv, Hv, Wv = v.shape
        return v.reshape(Bv, Cv, Hv // 2, 2, Wv // 2, 2).max(axis=(3, 5))

    x_theta = conv1x1(x, w_theta, b_theta)                 # (B, Cr, H, W)
    x_phy = maxpool2x2(conv1x1(x, w_phy, b_phy))           # (B, Cr, H/2, W/2)
    x_g = maxpool2x2(conv1x1(x, w_g, b_g))

    x_theta = jnp.transpose(x_theta.reshape(B, Cr, H * W), (0, 2, 1))   # (B, HW, Cr)
    x_phy = x_phy.reshape(B, Cr, -1)                                    # (B, Cr, HWp)
    x_sim = jnp.einsum('bnc,bcm->bnm', x_theta, x_phy, precision=hp)
    x_sim = x_sim / x_sim.shape[-1]
    x_sim = jnp.transpose(x_sim, (0, 2, 1))                             # (B, HWp, HW)
    x_g = x_g.reshape(B, Cr, -1)                                        # (B, Cr, HWp)
    x_out = jnp.einsum('bcm,bmn->bcn', x_g, x_sim, precision=hp)
    x_out = x_out.reshape(B, Cr, H, W)
    x_out = conv1x1(x_out, w_ext, b_ext)                                # (B, Cin, H, W)
    scale = bn_gamma / jnp.sqrt(bn_var + bn_eps)
    shift = bn_beta - bn_mean * scale
    return x_out * scale[None, :, None, None] + shift[None, :, None, None]


if __name__ == "__main__":
    key = jax.random.PRNGKey(0)
    B, Cin, H, W = 2, 32, 16, 16
    Cr = 16

    keys = jax.random.split(key, 13)
    s = 0.3
    x = jax.random.normal(keys[0], (B, Cin, H, W), dtype=jnp.float32)
    w_theta = s * jax.random.normal(keys[1], (Cin, Cr), dtype=jnp.float32)
    b_theta = s * jax.random.normal(keys[2], (Cr,), dtype=jnp.float32)
    w_phy = s * jax.random.normal(keys[3], (Cin, Cr), dtype=jnp.float32)
    b_phy = s * jax.random.normal(keys[4], (Cr,), dtype=jnp.float32)
    w_g = s * jax.random.normal(keys[5], (Cin, Cr), dtype=jnp.float32)
    b_g = s * jax.random.normal(keys[6], (Cr,), dtype=jnp.float32)
    w_ext = s * jax.random.normal(keys[7], (Cr, Cin), dtype=jnp.float32)
    b_ext = s * jax.random.normal(keys[8], (Cin,), dtype=jnp.float32)
    bn_gamma = 1.0 + 0.1 * jax.random.normal(keys[9], (Cin,), dtype=jnp.float32)
    bn_beta = 0.1 * jax.random.normal(keys[10], (Cin,), dtype=jnp.float32)
    bn_mean = 0.1 * jax.random.normal(keys[11], (Cin,), dtype=jnp.float32)
    bn_var = 0.5 + jax.nn.softplus(jax.random.normal(keys[12], (Cin,), dtype=jnp.float32))

    out = non_local_forward(x, w_theta, b_theta, w_phy, b_phy, w_g, b_g,
                            w_ext, b_ext, bn_gamma, bn_beta, bn_mean, bn_var)
    out = jax.block_until_ready(out)

    ref = non_local_reference(x, w_theta, b_theta, w_phy, b_phy, w_g, b_g,
                              w_ext, b_ext, bn_gamma, bn_beta, bn_mean, bn_var)

    assert out.shape == ref.shape == (B, Cin, H, W)
    # bf16 operands (f32 accumulation) -> compare with a tolerance scaled to the
    # output magnitude; structural bugs would give errors of order the values.
    err = float(jnp.max(jnp.abs(out - ref)))
    scale = float(jnp.max(jnp.abs(ref)))
    assert err <= 2.5e-2 * scale + 1e-3, f"max abs err = {err}, ref scale = {scale}"

    print("KERNEL_OK")
</pallas_src>

<mosaic_0001>
module attributes {stable_mosaic.version = 11 : i64} {
  func.func @_nonlocal_kernel(%arg0: i32, %arg1: i32, %arg2: memref<4x64x32xbf16, #tpu.memory_space<vmem>>, %arg3: memref<32x384xbf16, #tpu.memory_space<vmem>>, %arg4: memref<1x384xf32, #tpu.memory_space<vmem>>, %arg5: memref<128x32xbf16, #tpu.memory_space<vmem>>, %arg6: memref<1x32xf32, #tpu.memory_space<vmem>>, %arg7: memref<1x64x32xbf16, #tpu.memory_space<vmem>>, %arg8: memref<4x64x128xbf16, #tpu.memory_space<vmem>>, %arg9: memref<64x128xbf16, #tpu.memory_space<vmem>>, %arg10: memref<64x128xbf16, #tpu.memory_space<vmem>>) attributes {dimension_semantics = [#tpu.dimension_semantics<parallel>, #tpu.dimension_semantics<arbitrary>], iteration_bounds = array<i64: 2, 4>, scalar_prefetch = 0 : i64, scratch_operands = 3 : i64, tpu.core_type = #tpu.core_type<tc>, window_params = [{transform_indices = @transform_0, window_bounds = array<i64: 4, 64, 32>}, {pipeline_mode = #tpu.pipeline_mode<synchronous>, transform_indices = @transform_1, window_bounds = array<i64: 32, 384>}, {pipeline_mode = #tpu.pipeline_mode<synchronous>, transform_indices = @transform_2, window_bounds = array<i64: 1, 384>}, {pipeline_mode = #tpu.pipeline_mode<synchronous>, transform_indices = @transform_3, window_bounds = array<i64: 128, 32>}, {pipeline_mode = #tpu.pipeline_mode<synchronous>, transform_indices = @transform_4, window_bounds = array<i64: 1, 32>}, {transform_indices = @transform_5, window_bounds = array<i64: 1, 64, 32>}]} {
    %c0_i32 = arith.constant 0 : i32
    %0 = arith.cmpi eq, %arg1, %c0_i32 : i32
    %1 = arith.extui %0 : i1 to i32
    %c0_i32_0 = arith.constant 0 : i32
    %2 = arith.cmpi ne, %1, %c0_i32_0 : i32
    scf.if %2 {
      %c0_15 = arith.constant 0 : index
      %c0_16 = arith.constant 0 : index
      %21 = vector.load %arg3[%c0_15, %c0_16] : memref<32x384xbf16, #tpu.memory_space<vmem>>, vector<32x384xbf16>
      %c0_17 = arith.constant 0 : index
      %c0_18 = arith.constant 0 : index
      %22 = vector.load %arg4[%c0_17, %c0_18] : memref<1x384xf32, #tpu.memory_space<vmem>>, vector<1x384xf32>
      %23 = vector.shape_cast %22 : vector<1x384xf32> to vector<1x384xf32>
      %24 = vector.broadcast %23 : vector<1x384xf32> to vector<64x384xf32>
      %c0_19 = arith.constant 0 : index
      %c0_20 = arith.constant 0 : index
      %c0_21 = arith.constant 0 : index
      %25 = vector.load %arg2[%c0_19, %c0_20, %c0_21] : memref<4x64x32xbf16, #tpu.memory_space<vmem>>, vector<1x64x32xbf16>
      %26 = vector.shape_cast %25 : vector<1x64x32xbf16> to vector<64x32xbf16>
      %cst_22 = arith.constant dense<0.000000e+00> : vector<64x384xf32>
      %27 = tpu.matmul %26, %21, %cst_22 {dimension_numbers = #tpu.dot_dimension_numbers<[1], [0], [0], [1], [0, 0, 1, 1], [], []>} : vector<64x32xbf16>, vector<32x384xbf16>, vector<64x384xf32> -> vector<64x384xf32>
      %28 = arith.addf %27, %24 : vector<64x384xf32>
      %29 = arith.truncf %28 : vector<64x384xf32> to vector<64x384xbf16>
      %30 = vector.extract_strided_slice %29 {offsets = [0, 0], sizes = [64, 128], strides = [1, 1]} : vector<64x384xbf16> to vector<64x128xbf16>
      %31 = vector.extract_strided_slice %29 {offsets = [0, 128], sizes = [64, 128], strides = [1, 1]} : vector<64x384xbf16> to vector<64x128xbf16>
      %32 = vector.extract_strided_slice %29 {offsets = [0, 256], sizes = [64, 128], strides = [1, 1]} : vector<64x384xbf16> to vector<64x128xbf16>
      %c0_23 = arith.constant 0 : index
      %c0_24 = arith.constant 0 : index
      %c0_25 = arith.constant 0 : index
      %33 = vector.load %arg8[%c0_23, %c0_24, %c0_25] : memref<4x64x128xbf16, #tpu.memory_space<vmem>>, vector<1x64x128xbf16>
      %34 = vector.shape_cast %33 : vector<1x64x128xbf16> to vector<64x128xbf16>
      %35 = vector.shape_cast %30 : vector<64x128xbf16> to vector<1x64x128xbf16>
      tpu.vector_store %arg8[%c0_23, %c0_24, %c0_25], %35 {strides = array<i32>} : memref<4x64x128xbf16, #tpu.memory_space<vmem>>, vector<1x64x128xbf16>,
      %c0_26 = arith.constant 0 : index
      %c0_27 = arith.constant 0 : index
      %36 = vector.load %arg9[%c0_26, %c0_27] : memref<64x128xbf16, #tpu.memory_space<vmem>>, vector<64x128xbf16>
      tpu.vector_store %arg9[%c0_26, %c0_27], %31 {strides = array<i32>} : memref<64x128xbf16, #tpu.memory_space<vmem>>, vector<64x128xbf16>,
      %c0_28 = arith.constant 0 : index
      %c0_29 = arith.constant 0 : index
      %37 = vector.load %arg10[%c0_28, %c0_29] : memref<64x128xbf16, #tpu.memory_space<vmem>>, vector<64x128xbf16>
      tpu.vector_store %arg10[%c0_28, %c0_29], %32 {strides = array<i32>} : memref<64x128xbf16, #tpu.memory_space<vmem>>, vector<64x128xbf16>,
      %c1 = arith.constant 1 : index
      %c0_30 = arith.constant 0 : index
      %c0_31 = arith.constant 0 : index
      %38 = vector.load %arg2[%c1, %c0_30, %c0_31] : memref<4x64x32xbf16, #tpu.memory_space<vmem>>, vector<1x64x32xbf16>
      %39 = vector.shape_cast %38 : vector<1x64x32xbf16> to vector<64x32xbf16>
      %cst_32 = arith.constant dense<0.000000e+00> : vector<64x384xf32>
      %40 = tpu.matmul %39, %21, %cst_32 {dimension_numbers = #tpu.dot_dimension_numbers<[1], [0], [0], [1], [0, 0, 1, 1], [], []>} : vector<64x32xbf16>, vector<32x384xbf16>, vector<64x384xf32> -> vector<64x384xf32>
      %41 = arith.addf %40, %24 : vector<64x384xf32>
      %42 = arith.truncf %41 : vector<64x384xf32> to vector<64x384xbf16>
      %43 = vector.extract_strided_slice %42 {offsets = [0, 0], sizes = [64, 128], strides = [1, 1]} : vector<64x384xbf16> to vector<64x128xbf16>
      %44 = vector.extract_strided_slice %42 {offsets = [0, 128], sizes = [64, 128], strides = [1, 1]} : vector<64x384xbf16> to vector<64x128xbf16>
      %45 = vector.extract_strided_slice %42 {offsets = [0, 256], sizes = [64, 128], strides = [1, 1]} : vector<64x384xbf16> to vector<64x128xbf16>
      %c1_33 = arith.constant 1 : index
      %c0_34 = arith.constant 0 : index
      %c0_35 = arith.constant 0 : index
      %46 = vector.load %arg8[%c1_33, %c0_34, %c0_35] : memref<4x64x128xbf16, #tpu.memory_space<vmem>>, vector<1x64x128xbf16>
      %47 = vector.shape_cast %46 : vector<1x64x128xbf16> to vector<64x128xbf16>
      %48 = vector.shape_cast %43 : vector<64x128xbf16> to vector<1x64x128xbf16>
      tpu.vector_store %arg8[%c1_33, %c0_34, %c0_35], %48 {strides = array<i32>} : memref<4x64x128xbf16, #tpu.memory_space<vmem>>, vector<1x64x128xbf16>,
      %c0_36 = arith.constant 0 : index
      %c0_37 = arith.constant 0 : index
      %49 = vector.load %arg9[%c0_36, %c0_37] : memref<64x128xbf16, #tpu.memory_space<vmem>>, vector<64x128xbf16>
      %50 = arith.maximumf %49, %44 : vector<64x128xbf16>
      %c0_38 = arith.constant 0 : index
      %c0_39 = arith.constant 0 : index
      %51 = vector.load %arg9[%c0_38, %c0_39] : memref<64x128xbf16, #tpu.memory_space<vmem>>, vector<64x128xbf16>
      tpu.vector_store %arg9[%c0_38, %c0_39], %50 {strides = array<i32>} : memref<64x128xbf16, #tpu.memory_space<vmem>>, vector<64x128xbf16>,
      %c0_40 = arith.constant 0 : index
      %c0_41 = arith.constant 0 : index
      %52 = vector.load %arg10[%c0_40, %c0_41] : memref<64x128xbf16, #tpu.memory_space<vmem>>, vector<64x128xbf16>
      %53 = arith.maximumf %52, %45 : vector<64x128xbf16>
      %c0_42 = arith.constant 0 : index
      %c0_43 = arith.constant 0 : index
      %54 = vector.load %arg10[%c0_42, %c0_43] : memref<64x128xbf16, #tpu.memory_space<vmem>>, vector<64x128xbf16>
      tpu.vector_store %arg10[%c0_42, %c0_43], %53 {strides = array<i32>} : memref<64x128xbf16, #tpu.memory_space<vmem>>, vector<64x128xbf16>,
      %c2 = arith.constant 2 : index
      %c0_44 = arith.constant 0 : index
      %c0_45 = arith.constant 0 : index
      %55 = vector.load %arg2[%c2, %c0_44, %c0_45] : memref<4x64x32xbf16, #tpu.memory_space<vmem>>, vector<1x64x32xbf16>
      %56 = vector.shape_cast %55 : vector<1x64x32xbf16> to vector<64x32xbf16>
      %cst_46 = arith.constant dense<0.000000e+00> : vector<64x384xf32>
      %57 = tpu.matmul %56, %21, %cst_46 {dimension_numbers = #tpu.dot_dimension_numbers<[1], [0], [0], [1], [0, 0, 1, 1], [], []>} : vector<64x32xbf16>, vector<32x384xbf16>, vector<64x384xf32> -> vector<64x384xf32>
      %58 = arith.addf %57, %24 : vector<64x384xf32>
      %59 = arith.truncf %58 : vector<64x384xf32> to vector<64x384xbf16>
      %60 = vector.extract_strided_slice %59 {offsets = [0, 0], sizes = [64, 128], strides = [1, 1]} : vector<64x384xbf16> to vector<64x128xbf16>
      %61 = vector.extract_strided_slice %59 {offsets = [0, 128], sizes = [64, 128], strides = [1, 1]} : vector<64x384xbf16> to vector<64x128xbf16>
      %62 = vector.extract_strided_slice %59 {offsets = [0, 256], sizes = [64, 128], strides = [1, 1]} : vector<64x384xbf16> to vector<64x128xbf16>
      %c2_47 = arith.constant 2 : index
      %c0_48 = arith.constant 0 : index
      %c0_49 = arith.constant 0 : index
      %63 = vector.load %arg8[%c2_47, %c0_48, %c0_49] : memref<4x64x128xbf16, #tpu.memory_space<vmem>>, vector<1x64x128xbf16>
      %64 = vector.shape_cast %63 : vector<1x64x128xbf16> to vector<64x128xbf16>
      %65 = vector.shape_cast %60 : vector<64x128xbf16> to vector<1x64x128xbf16>
      tpu.vector_store %arg8[%c2_47, %c0_48, %c0_49], %65 {strides = array<i32>} : memref<4x64x128xbf16, #tpu.memory_space<vmem>>, vector<1x64x128xbf16>,
      %c0_50 = arith.constant 0 : index
      %c0_51 = arith.constant 0 : index
      %66 = vector.load %arg9[%c0_50, %c0_51] : memref<64x128xbf16, #tpu.memory_space<vmem>>, vector<64x128xbf16>
      %67 = arith.maximumf %66, %61 : vector<64x128xbf16>
      %c0_52 = arith.constant 0 : index
      %c0_53 = arith.constant 0 : index
      %68 = vector.load %arg9[%c0_52, %c0_53] : memref<64x128xbf16, #tpu.memory_space<vmem>>, vector<64x128xbf16>
      tpu.vector_store %arg9[%c0_52, %c0_53], %67 {strides = array<i32>} : memref<64x128xbf16, #tpu.memory_space<vmem>>, vector<64x128xbf16>,
      %c0_54 = arith.constant 0 : index
      %c0_55 = arith.constant 0 : index
      %69 = vector.load %arg10[%c0_54, %c0_55] : memref<64x128xbf16, #tpu.memory_space<vmem>>, vector<64x128xbf16>
      %70 = arith.maximumf %69, %62 : vector<64x128xbf16>
      %c0_56 = arith.constant 0 : index
      %c0_57 = arith.constant 0 : index
      %71 = vector.load %arg10[%c0_56, %c0_57] : memref<64x128xbf16, #tpu.memory_space<vmem>>, vector<64x128xbf16>
      tpu.vector_store %arg10[%c0_56, %c0_57], %70 {strides = array<i32>} : memref<64x128xbf16, #tpu.memory_space<vmem>>, vector<64x128xbf16>,
      %c3 = arith.constant 3 : index
      %c0_58 = arith.constant 0 : index
      %c0_59 = arith.constant 0 : index
      %72 = vector.load %arg2[%c3, %c0_58, %c0_59] : memref<4x64x32xbf16, #tpu.memory_space<vmem>>, vector<1x64x32xbf16>
      %73 = vector.shape_cast %72 : vector<1x64x32xbf16> to vector<64x32xbf16>
      %cst_60 = arith.constant dense<0.000000e+00> : vector<64x384xf32>
      %74 = tpu.matmul %73, %21, %cst_60 {dimension_numbers = #tpu.dot_dimension_numbers<[1], [0], [0], [1], [0, 0, 1, 1], [], []>} : vector<64x32xbf16>, vector<32x384xbf16>, vector<64x384xf32> -> vector<64x384xf32>
      %75 = arith.addf %74, %24 : vector<64x384xf32>
      %76 = arith.truncf %75 : vector<64x384xf32> to vector<64x384xbf16>
      %77 = vector.extract_strided_slice %76 {offsets = [0, 0], sizes = [64, 128], strides = [1, 1]} : vector<64x384xbf16> to vector<64x128xbf16>
      %78 = vector.extract_strided_slice %76 {offsets = [0, 128], sizes = [64, 128], strides = [1, 1]} : vector<64x384xbf16> to vector<64x128xbf16>
      %79 = vector.extract_strided_slice %76 {offsets = [0, 256], sizes = [64, 128], strides = [1, 1]} : vector<64x384xbf16> to vector<64x128xbf16>
      %c3_61 = arith.constant 3 : index
      %c0_62 = arith.constant 0 : index
      %c0_63 = arith.constant 0 : index
      %80 = vector.load %arg8[%c3_61, %c0_62, %c0_63] : memref<4x64x128xbf16, #tpu.memory_space<vmem>>, vector<1x64x128xbf16>
      %81 = vector.shape_cast %80 : vector<1x64x128xbf16> to vector<64x128xbf16>
      %82 = vector.shape_cast %77 : vector<64x128xbf16> to vector<1x64x128xbf16>
      tpu.vector_store %arg8[%c3_61, %c0_62, %c0_63], %82 {strides = array<i32>} : memref<4x64x128xbf16, #tpu.memory_space<vmem>>, vector<1x64x128xbf16>,
      %c0_64 = arith.constant 0 : index
      %c0_65 = arith.constant 0 : index
      %83 = vector.load %arg9[%c0_64, %c0_65] : memref<64x128xbf16, #tpu.memory_space<vmem>>, vector<64x128xbf16>
      %84 = arith.maximumf %83, %78 : vector<64x128xbf16>
      %c0_66 = arith.constant 0 : index
      %c0_67 = arith.constant 0 : index
      %85 = vector.load %arg9[%c0_66, %c0_67] : memref<64x128xbf16, #tpu.memory_space<vmem>>, vector<64x128xbf16>
      tpu.vector_store %arg9[%c0_66, %c0_67], %84 {strides = array<i32>} : memref<64x128xbf16, #tpu.memory_space<vmem>>, vector<64x128xbf16>,
      %c0_68 = arith.constant 0 : index
      %c0_69 = arith.constant 0 : index
      %86 = vector.load %arg10[%c0_68, %c0_69] : memref<64x128xbf16, #tpu.memory_space<vmem>>, vector<64x128xbf16>
      %87 = arith.maximumf %86, %79 : vector<64x128xbf16>
      %c0_70 = arith.constant 0 : index
      %c0_71 = arith.constant 0 : index
      %88 = vector.load %arg10[%c0_70, %c0_71] : memref<64x128xbf16, #tpu.memory_space<vmem>>, vector<64x128xbf16>
      tpu.vector_store %arg10[%c0_70, %c0_71], %87 {strides = array<i32>} : memref<64x128xbf16, #tpu.memory_space<vmem>>, vector<64x128xbf16>,
    } else {
    }
    %3 = arith.index_cast %arg1 : i32 to index
    %c0 = arith.constant 0 : index
    %c0_1 = arith.constant 0 : index
    %4 = vector.load %arg8[%3, %c0, %c0_1] : memref<4x64x128xbf16, #tpu.memory_space<vmem>>, vector<1x64x128xbf16>
    %5 = vector.shape_cast %4 : vector<1x64x128xbf16> to vector<64x128xbf16>
    %c0_2 = arith.constant 0 : index
    %c0_3 = arith.constant 0 : index
    %6 = vector.load %arg9[%c0_2, %c0_3] : memref<64x128xbf16, #tpu.memory_space<vmem>>, vector<64x128xbf16>
    %cst = arith.constant dense<0.000000e+00> : vector<64x64xf32>
    %7 = tpu.matmul %5, %6, %cst {dimension_numbers = #tpu.dot_dimension_numbers<[1], [1], [0], [0], [0, 0, 1, 0], [], []>} : vector<64x128xbf16>, vector<64x128xbf16>, vector<64x64xf32> -> vector<64x64xf32>
    %8 = arith.truncf %7 : vector<64x64xf32> to vector<64x64xbf16>
    %c0_4 = arith.constant 0 : index
    %c0_5 = arith.constant 0 : index
    %9 = vector.load %arg10[%c0_4, %c0_5] : memref<64x128xbf16, #tpu.memory_space<vmem>>, vector<64x128xbf16>
    %cst_6 = arith.constant dense<0.000000e+00> : vector<64x128xf32>
    %10 = tpu.matmul %8, %9, %cst_6 {dimension_numbers = #tpu.dot_dimension_numbers<[1], [0], [0], [1], [0, 0, 1, 1], [], []>} : vector<64x64xbf16>, vector<64x128xbf16>, vector<64x128xf32> -> vector<64x128xf32>
    %11 = arith.truncf %10 : vector<64x128xf32> to vector<64x128xbf16>
    %c0_7 = arith.constant 0 : index
    %c0_8 = arith.constant 0 : index
    %12 = vector.load %arg5[%c0_7, %c0_8] : memref<128x32xbf16, #tpu.memory_space<vmem>>, vector<128x32xbf16>
    %cst_9 = arith.constant dense<0.000000e+00> : vector<64x32xf32>
    %13 = tpu.matmul %11, %12, %cst_9 {dimension_numbers = #tpu.dot_dimension_numbers<[1], [0], [0], [1], [0, 0, 1, 1], [], []>} : vector<64x128xbf16>, vector<128x32xbf16>, vector<64x32xf32> -> vector<64x32xf32>
    %c0_10 = arith.constant 0 : index
    %c0_11 = arith.constant 0 : index
    %14 = vector.load %arg6[%c0_10, %c0_11] : memref<1x32xf32, #tpu.memory_space<vmem>>, vector<1x32xf32>
    %15 = vector.broadcast %14 : vector<1x32xf32> to vector<64x32xf32>
    %16 = arith.addf %13, %15 : vector<64x32xf32>
    %17 = arith.truncf %16 : vector<64x32xf32> to vector<64x32xbf16>
    %c0_12 = arith.constant 0 : index
    %c0_13 = arith.constant 0 : index
    %c0_14 = arith.constant 0 : index
    %18 = vector.load %arg7[%c0_12, %c0_13, %c0_14] : memref<1x64x32xbf16, #tpu.memory_space<vmem>>, vector<1x64x32xbf16>
    %19 = vector.shape_cast %18 : vector<1x64x32xbf16> to vector<64x32xbf16>
    %20 = vector.shape_cast %17 : vector<64x32xbf16> to vector<1x64x32xbf16>
    tpu.vector_store %arg7[%c0_12, %c0_13, %c0_14], %20 {strides = array<i32>} : memref<1x64x32xbf16, #tpu.memory_space<vmem>>, vector<1x64x32xbf16>,
    return
  }
  func.func @transform_0(%arg0: i32, %arg1: i32) -> (i32, i32, i32) {
    %c0_i32 = arith.constant 0 : i32
    %c0_i32_0 = arith.constant 0 : i32
    %c0_i32_1 = arith.constant 0 : i32
    return %arg0, %c0_i32, %c0_i32_0 : i32, i32, i32
  }
  func.func @transform_1(%arg0: i32, %arg1: i32) -> (i32, i32) {
    %c0_i32 = arith.constant 0 : i32
    %c0_i32_0 = arith.constant 0 : i32
    %c0_i32_1 = arith.constant 0 : i32
    return %c0_i32, %c0_i32_0 : i32, i32
  }
  func.func @transform_2(%arg0: i32, %arg1: i32) -> (i32, i32) {
    %c0_i32 = arith.constant 0 : i32
    %c0_i32_0 = arith.constant 0 : i32
    %c0_i32_1 = arith.constant 0 : i32
    return %c0_i32, %c0_i32_0 : i32, i32
  }
  func.func @transform_3(%arg0: i32, %arg1: i32) -> (i32, i32) {
    %c0_i32 = arith.constant 0 : i32
    %c0_i32_0 = arith.constant 0 : i32
    %c0_i32_1 = arith.constant 0 : i32
    return %c0_i32, %c0_i32_0 : i32, i32
  }
  func.func @transform_4(%arg0: i32, %arg1: i32) -> (i32, i32) {
    %c0_i32 = arith.constant 0 : i32
    %c0_i32_0 = arith.constant 0 : i32
    %c0_i32_1 = arith.constant 0 : i32
    return %c0_i32, %c0_i32_0 : i32, i32
  }
  func.func @transform_5(%arg0: i32, %arg1: i32) -> (i32, i32, i32) {
    %c4_i32 = arith.constant 4 : i32
    %0 = arith.muli %c4_i32, %arg0 : i32
    %1 = arith.addi %0, %arg1 : i32
    %c0_i32 = arith.constant 0 : i32
    %c0_i32_0 = arith.constant 0 : i32
    %c0_i32_1 = arith.constant 0 : i32
    return %1, %c0_i32, %c0_i32_0 : i32, i32, i32
  }
}

</mosaic_0001>

<llo_original>
// kernel: tpu_custom_call.1
$region0: #{tpu_custom_call.1}
  #allocation0 [shape = 'u32[]', space=smem, size = 0x4, offset = 0x4, fixed_abs, tag = 'smem constant byte address 0x4 - core index']
  #allocation1 [shape = 'u32[144,128]{1,0:T(1,128)}', space=vmem, size = 0x12000, scoped, tag = 'internal scratch']
  #allocation2 [shape = 'bf16[4,64,128]{2,1,0:T(16,128)(2,1)}', space=vmem, size = 0x10000, scoped, tag = 'scratch operand']
  #allocation3 [shape = 'bf16[64,128]{1,0:T(16,128)(2,1)}', space=vmem, size = 0x4000, scoped, tag = 'scratch operand']
  #allocation4 [shape = 'bf16[64,128]{1,0:T(16,128)(2,1)}', space=vmem, size = 0x4000, scoped, tag = 'scratch operand']
  %s0 = inlined_call_operand.vmem [shape: bf16[8,64,32], index: 0, kind: input, shape index: {}]
  %s1 = inlined_call_operand.vmem [shape: bf16[32,384], index: 1, kind: input, shape index: {}]
  %s2 = inlined_call_operand.vmem [shape: f32[1,384], index: 2, kind: input, shape index: {}]
  %s3 = inlined_call_operand.vmem [shape: bf16[128,32], index: 3, kind: input, shape index: {}]
  %s4 = inlined_call_operand.vmem [shape: f32[1,32], index: 4, kind: input, shape index: {}]
  %s5 = inlined_call_operand.vmem [shape: bf16[8,64,32], index: 5, kind: output, shape index: {}]
  %s6 = sld [smem:[#allocation0]]
  $region57: #{tpu_custom_call.1} parent=0
    _
  %s8 = ssub.s32 1, %s6
  %s9 = scalar_select 0, %s8, %s6
  loop: start=0, step=1, limit=10
  $region2: #{tpu_custom_call.1} parent=0 // loop_pre_header
    _
  $region3: #{tpu_custom_call.1} parent=0 // loop_header
    %s11 = sphi 0, %s15
    %p12 = scmp.ge.s32.totalorder %s11, 10
    %s18 = sphi 0, %s30
    %s19 = sphi 0, %s26
    %s20 = sphi 0, %s18
    %s21 = sphi 0, %s19
    %s22 = sphi 0, %s20
    %s23 = sphi 0, %s21
    %s33 = sphi 0, %s35
    %s36 = sphi 0, %s33
    %s37 = sphi 0, %s36
    %s53 = sphi 0, %s37
    %s57 = sphi 0, %s57
    %s59 = sphi 0, %s57
    %s60 = sphi 0, %s59
    %s74 = sphi 0, %s60
    %s78 = sphi 0, %s78
    %s80 = sphi 0, %s78
    %s81 = sphi 0, %s80
    %s95 = sphi 0, %s81
    %s99 = sphi 0, %s99
    %s101 = sphi 0, %s99
    %s102 = sphi 0, %s101
    %s116 = sphi 0, %s102
    %s120 = sphi 0, %s120
    %s122 = sphi 0, %s120
    %s123 = sphi 0, %s122
    %s137 = sphi 0, %s123
    %s147 = sphi 0, %s149
    %s150 = sphi 0, %s147
    %s151 = sphi 0, %s150
    %s167 = sphi 0, %s151
  $region4: #{tpu_custom_call.1} parent=0 // loop_header_branch
    %14 = sbr.rel (%p12) target = $region8
  $region5: #{tpu_custom_call.1} parent=0 // loop_body
    %s16 = ssub.s32 %s11, 1
    %s17 = ssub.s32 %s11, 2
    %s24 = sadd.s32 1, %s19
    %p25 = scmp.ge.s32.totalorder %s24, 4
    %s26 = scalar_select %p25, 0, %s24
    %s27 = sadd.s32 1, %s18
    %s28 = scalar_select %p25, %s27, %s18
    %p29 = scmp.ge.s32.totalorder %s28, 2
    %s30 = scalar_select %p29, 0, %s28
    %s31 = ssub.s32 %s18, %s30
    %p32 = scmp.eq.s32.totalorder %s31, 0
    %s34 = sadd.s32 %s33, 1
    %s35 = scalar_select %p32, %s33, %s34
    %p38 = pneg %p32
    %p39 = scmp.eq.s32.totalorder %s11, 7
    %p40 = por %p38, %p39
    %p41 = scmp.ne.s32.totalorder %s33, %s36
    %p42 = scmp.eq.s32.totalorder %s11, 0
    %p43 = por %p41, %p42
    %p44 = scmp.ne.s32.totalorder %s33, %s36
    %p45 = scmp.eq.s32.totalorder %s16, 7
    %p46 = por %p44, %p45
    %p47 = scmp.ne.s32.totalorder %s36, %s37
    %p48 = scmp.eq.s32.totalorder %s16, 0
    %p49 = por %p47, %p48
    %p50 = scmp.ne.s32.totalorder %s36, %s37
    %p51 = scmp.eq.s32.totalorder %s17, 7
    %p52 = por %p50, %p51
    %p54 = scmp.ne.s32.totalorder %s37, %s53
    %p55 = scmp.eq.s32.totalorder %s17, 0
    %p56 = por %p54, %p55
    %s58 = sadd.s32 %s57, 1
    %p61 = scmp.eq.s32.totalorder %s11, 7
    %p62 = scmp.ne.s32.totalorder %s57, %s59
    %p63 = scmp.eq.s32.totalorder %s11, 0
    %p64 = por %p62, %p63
    %p65 = scmp.ne.s32.totalorder %s57, %s59
    %p66 = scmp.eq.s32.totalorder %s16, 7
    %p67 = por %p65, %p66
    %p68 = scmp.ne.s32.totalorder %s59, %s60
    %p69 = scmp.eq.s32.totalorder %s16, 0
    %p70 = por %p68, %p69
    %p71 = scmp.ne.s32.totalorder %s59, %s60
    %p72 = scmp.eq.s32.totalorder %s17, 7
    %p73 = por %p71, %p72
    %p75 = scmp.ne.s32.totalorder %s60, %s74
    %p76 = scmp.eq.s32.totalorder %s17, 0
    %p77 = por %p75, %p76
    %s79 = sadd.s32 %s78, 1
    %p82 = scmp.eq.s32.totalorder %s11, 7
    %p83 = scmp.ne.s32.totalorder %s78, %s80
    %p84 = scmp.eq.s32.totalorder %s11, 0
    %p85 = por %p83, %p84
    %p86 = scmp.ne.s32.totalorder %s78, %s80
    %p87 = scmp.eq.s32.totalorder %s16, 7
    %p88 = por %p86, %p87
    %p89 = scmp.ne.s32.totalorder %s80, %s81
    %p90 = scmp.eq.s32.totalorder %s16, 0
    %p91 = por %p89, %p90
    %p92 = scmp.ne.s32.totalorder %s80, %s81
    %p93 = scmp.eq.s32.totalorder %s17, 7
    %p94 = por %p92, %p93
    %p96 = scmp.ne.s32.totalorder %s81, %s95
    %p97 = scmp.eq.s32.totalorder %s17, 0
    %p98 = por %p96, %p97
    %s100 = sadd.s32 %s99, 1
    %p103 = scmp.eq.s32.totalorder %s11, 7
    %p104 = scmp.ne.s32.totalorder %s99, %s101
    %p105 = scmp.eq.s32.totalorder %s11, 0
    %p106 = por %p104, %p105
    %p107 = scmp.ne.s32.totalorder %s99, %s101
    %p108 = scmp.eq.s32.totalorder %s16, 7
    %p109 = por %p107, %p108
    %p110 = scmp.ne.s32.totalorder %s101, %s102
    %p111 = scmp.eq.s32.totalorder %s16, 0
    %p112 = por %p110, %p111
    %p113 = scmp.ne.s32.totalorder %s101, %s102
    %p114 = scmp.eq.s32.totalorder %s17, 7
    %p115 = por %p113, %p114
    %p117 = scmp.ne.s32.totalorder %s102, %s116
    %p118 = scmp.eq.s32.totalorder %s17, 0
    %p119 = por %p117, %p118
    %s121 = sadd.s32 %s120, 1
    %p124 = scmp.eq.s32.totalorder %s11, 7
    %p125 = scmp.ne.s32.totalorder %s120, %s122
    %p126 = scmp.eq.s32.totalorder %s11, 0
    %p127 = por %p125, %p126
    %p128 = scmp.ne.s32.totalorder %s120, %s122
    %p129 = scmp.eq.s32.totalorder %s16, 7
    %p130 = por %p128, %p129
    %p131 = scmp.ne.s32.totalorder %s122, %s123
    %p132 = scmp.eq.s32.totalorder %s16, 0
    %p133 = por %p131, %p132
    %p134 = scmp.ne.s32.totalorder %s122, %s123
    %p135 = scmp.eq.s32.totalorder %s17, 7
    %p136 = por %p134, %p135
    %p138 = scmp.ne.s32.totalorder %s123, %s137
    %p139 = scmp.eq.s32.totalorder %s17, 0
    %p140 = por %p138, %p139
    %s141 = smul.u32 %s18, 4
    %s142 = sadd.s32 %s141, %s19
    %s143 = smul.u32 %s30, 4
    %s144 = sadd.s32 %s143, %s26
    %s145 = ssub.s32 %s142, %s144
    %p146 = scmp.eq.s32.totalorder %s145, 0
    %s148 = sadd.s32 %s147, 1
    %s149 = scalar_select %p146, %s147, %s148
    %p152 = pneg %p146
    %p153 = scmp.eq.s32.totalorder %s11, 7
    %p154 = por %p152, %p153
    %p155 = scmp.ne.s32.totalorder %s147, %s150
    %p156 = scmp.eq.s32.totalorder %s11, 0
    %p157 = por %p155, %p156
    %p158 = scmp.ne.s32.totalorder %s147, %s150
    %p159 = scmp.eq.s32.totalorder %s16, 7
    %p160 = por %p158, %p159
    %p161 = scmp.ne.s32.totalorder %s150, %s151
    %p162 = scmp.eq.s32.totalorder %s16, 0
    %p163 = por %p161, %p162
    %p164 = scmp.ne.s32.totalorder %s150, %s151
    %p165 = scmp.eq.s32.totalorder %s17, 7
    %p166 = por %p164, %p165
    %p168 = scmp.ne.s32.totalorder %s151, %s167
    %p169 = scmp.eq.s32.totalorder %s17, 0
    %p170 = por %p168, %p169
    %p171 = scmp.le.s32.totalorder 1, %s11
    %p172 = scmp.lt.s32.totalorder %s11, 9
    %p173 = pnand %p171, %p172
    %p174 = pneg %p173
    // Predicated region
    $region9: #{tpu_custom_call.1} parent=5 // pred_check
      _
    $region10: #{tpu_custom_call.1} parent=5 // pred_check_branch
      %176 = sbr.rel (%p173) target = $region12
    $region11: #{tpu_custom_call.1} parent=5 // pred_region
      %s177 = ssub.s32 %s11, 1
      // Predicated region
      $region13: #{tpu_custom_call.1} parent=11 // pred_check
        %p178 = pneg %p70
      $region14: #{tpu_custom_call.1} parent=11 // pred_check_branch
        %180 = sbr.rel (%p178) target = $region16
      $region15: #{tpu_custom_call.1} parent=11 // pred_region
        _
      $region16: #{tpu_custom_call.1} parent=11 // pred_fallthru
        _
      // Predicated region
      $region17: #{tpu_custom_call.1} parent=11 // pred_check
        %p181 = pneg %p91
      $region18: #{tpu_custom_call.1} parent=11 // pred_check_branch
        %183 = sbr.rel (%p181) target = $region20
      $region19: #{tpu_custom_call.1} parent=11 // pred_region
        _
      $region20: #{tpu_custom_call.1} parent=11 // pred_fallthru
        _
      // Predicated region
      $region21: #{tpu_custom_call.1} parent=11 // pred_check
        %p184 = pneg %p112
      $region22: #{tpu_custom_call.1} parent=11 // pred_check_branch
        %186 = sbr.rel (%p184) target = $region24
      $region23: #{tpu_custom_call.1} parent=11 // pred_region
        _
      $region24: #{tpu_custom_call.1} parent=11 // pred_fallthru
        _
      // Predicated region
      $region25: #{tpu_custom_call.1} parent=11 // pred_check
        %p187 = pneg %p133
      $region26: #{tpu_custom_call.1} parent=11 // pred_check_branch
        %189 = sbr.rel (%p187) target = $region28
      $region27: #{tpu_custom_call.1} parent=11 // pred_region
        _
      $region28: #{tpu_custom_call.1} parent=11 // pred_fallthru
        _
    $region12: #{tpu_custom_call.1} parent=5 // pred_fallthru
      _
    %p190 = scmp.lt.s32.totalorder %s11, 8
    // Predicated region
    $region29: #{tpu_custom_call.1} parent=5 // pred_check
      %p191 = pneg %p190
    $region30: #{tpu_custom_call.1} parent=5 // pred_check_branch
      %193 = sbr.rel (%p191) target = $region32
    $region31: #{tpu_custom_call.1} parent=5 // pred_region
      // Predicated region
      $region33: #{tpu_custom_call.1} parent=31 // pred_check
        %p194 = pneg %p43
      $region34: #{tpu_custom_call.1} parent=31 // pred_check_branch
        %196 = sbr.rel (%p194) target = $region36
      $region35: #{tpu_custom_call.1} parent=31 // pred_region
        %s197 = smul.u32 4, %s18
        %p198 = scmp.lt.s32.totalorder %s197, 7
        %s199 = scalar_select %p198, %s197, 7
        %s200 = smul.addr %s199, 8
        %s201 = smul.addr %s200, 4
        %s202 = scalar_lea.vmem %s0, %s201
        %s203 = smul.u32 4, %s18
      $region36: #{tpu_custom_call.1} parent=31 // pred_fallthru
        _
    $region32: #{tpu_custom_call.1} parent=5 // pred_fallthru
      _
    %p204 = scmp.le.s32.totalorder 1, %s11
    %p205 = scmp.lt.s32.totalorder %s11, 9
    %p206 = pnand %p204, %p205
    %p207 = pneg %p206
    // Predicated region
    $region37: #{tpu_custom_call.1} parent=5 // pred_check
      _
    $region38: #{tpu_custom_call.1} parent=5 // pred_check_branch
      %209 = sbr.rel (%p206) target = $region40
    $region39: #{tpu_custom_call.1} parent=5 // pred_region
      %s210 = ssub.s32 %s11, 1
      %s211 = smul.u32 4, %s20
      %p212 = scmp.lt.s32.totalorder %s211, 7
      %s213 = scalar_select %p212, %s211, 7
      %s214 = smul.addr %s213, 8
      %s215 = smul.addr %s214, 4
      %s216 = scalar_lea.vmem %s0, %s215
      %p217 = pneg %p49
      %p218 = pneg %p46
      %p219 = pneg %p70
      %p220 = pneg %p67
      %p221 = pneg %p91
      %p222 = pneg %p88
      %p223 = pneg %p112
      %p224 = pneg %p109
      %p225 = pneg %p133
      %p226 = pneg %p130
      %p227 = pneg %p163
      %p228 = pneg %p160
      %s229 = smul.u32 %s20, 4
      %s230 = sadd.s32 %s229, %s21
      %p231 = scmp.lt.s32.totalorder %s230, 7
      %s232 = scalar_select %p231, %s230, 7
      %s233 = smul.addr %s232, 8
      %s234 = smul.addr %s233, 4
      %s235 = scalar_lea.vmem %s5, %s234
      %s236 = smul.u32 4, %s20
      %p237 = scmp.lt.s32.totalorder %s236, 7
      %s238 = scalar_select %p237, %s236, 7
      %s239 = smul.addr %s238, 8
      %s240 = smul.addr %s239, 4
      %s241 = scalar_lea.vmem %s0, %s240
      %s242 = smul.u32 4, %s20
      %s243 = smul.u32 %s20, 4
      %s244 = sadd.s32 %s243, %s21
      %p245 = scmp.lt.s32.totalorder %s244, 7
      %s246 = scalar_select %p245, %s244, 7
      %s247 = smul.addr %s246, 8
      %s248 = smul.addr %s247, 4
      %s249 = scalar_lea.vmem %s5, %s248
      %s250 = smul.u32 %s20, 4
      %s251 = sadd.s32 %s250, %s21
      %p253 = scmp.eq.s32.totalorder %s21, 0
      // Predicated region
      $region41: #{tpu_custom_call.1} parent=39 // pred_check
        %p254 = pneg %p253
      $region42: #{tpu_custom_call.1} parent=39 // pred_check_branch
        %256 = sbr.rel (%p254) target = $region44
      $region43: #{tpu_custom_call.1} parent=39 // pred_region
        %v257 = vld [vmem:[%s1] sm:$0xff]
        %v258 = vld [vmem:[%s1 + $0x8] sm:$0xf]
        %v259 = vld [vmem:[%s1 + $0xc] sm:$0xff]
        %v260 = vld [vmem:[%s1 + $0x14] sm:$0xf]
        %v261 = vld [vmem:[%s1 + $0x18] sm:$0xff]
        %v262 = vld [vmem:[%s1 + $0x20] sm:$0xf]
        %v263 = vld [vmem:[%s1 + $0x24] sm:$0xff]
        %v264 = vld [vmem:[%s1 + $0x2c] sm:$0xf]
        %v265 = vld [vmem:[%s2] sm:$0x7]
        %v267 = vlaneseq
        %v268 = vshrl.u32 %v267, 7
        %v269 = vsub.s32 0, %v268
        %v270 = vrot.slane %v265, %v269
        %v271 = vlaneseq
        %v272 = vshrl.u32 %v271, 7
        %v273 = vsub.s32 1, %v272
        %v274 = vrot.slane %v265, %v273
        %v275 = vlaneseq
        %v276 = vshrl.u32 %v275, 7
        %v277 = vsub.s32 2, %v276
        %v278 = vrot.slane %v265, %v277
        %v282 = vld [vmem:[%s241] sm:$0xf]
        %v283 = vld [vmem:[%s241 + $0x4] sm:$0xf]
        %v284 = vld [vmem:[%s241 + $0x8] sm:$0xf]
        %v285 = vld [vmem:[%s241 + $0xc] sm:$0xf]
        %v286 = vld [vmem:[%s241 + $0x10] sm:$0xf]
        %v287 = vld [vmem:[%s241 + $0x14] sm:$0xf]
        %v288 = vld [vmem:[%s241 + $0x18] sm:$0xf]
        %v289 = vld [vmem:[%s241 + $0x1c] sm:$0xf]
        %v298 = vunpack.c.l.b16 %v282
        %v299 = vunpack.c.l.b16 %v283
        %v300 = vunpack.c.l.b16 %v284
        %v301 = vunpack.c.l.b16 %v285
        %v302 = vunpack.c.l.b16 %v286
        %v303 = vunpack.c.l.b16 %v287
        %v304 = vunpack.c.l.b16 %v288
        %v305 = vunpack.c.l.b16 %v289
        %v306 = vpack.c.b16 %v299, %v298
        %v307 = vpack.c.b16 %v301, %v300
        %v308 = vpack.c.b16 %v303, %v302
        %v309 = vpack.c.b16 %v305, %v304
        %v318 = vunpack.c.l.b16 %v257
        %v319 = vunpack.c.h.b16 %v257
        %v320 = vunpack.c.l.b16 %v258
        %v321 = vunpack.c.l.b16 %v259
        %v322 = vunpack.c.h.b16 %v259
        %v323 = vunpack.c.l.b16 %v260
        %v324 = vunpack.c.l.b16 %v261
        %v325 = vunpack.c.h.b16 %v261
        %v326 = vunpack.c.l.b16 %v262
        %v327 = vunpack.c.l.b16 %v263
        %v328 = vunpack.c.h.b16 %v263
        %v329 = vunpack.c.l.b16 %v264
        %v330 = vpack.c.b16 %v321, %v318
        %v331 = vpack.c.b16 %v322, %v319
        %v332 = vpack.c.b16 %v323, %v320
        %v333 = vpack.c.b16 %v327, %v324
        %v334 = vpack.c.b16 %v328, %v325
        %v335 = vpack.c.b16 %v329, %v326
        %vm342 = vcmask 261120
        %v344 = vsel %vm342, %v306, 0
        %v347 = vsel %vm342, %v307, 0
        %v350 = vsel %vm342, %v308, 0
        %v353 = vsel %vm342, %v309, 0
        %355 = vmatprep.subr.bf16.mxu0 %v331
        %356 = vmatpush1.bf16.msra.mxu0 %v330
        %357 = vmatprep.subr.bf16.mxu0 %v334
        %358 = vmatpush1.bf16.msra.mxu0 %v333
        %359 = vmatprep.subr.bf16.mxu0 0
        %360 = vmatpush1.bf16.msra.mxu0 0
        %361 = vmatprep.subr.bf16.mxu0 0
        %362 = vmatpush1.bf16.msra.mxu0 0
        %363 = vmatprep.subr.bf16.mxu0 0
        %364 = vmatpush1.bf16.msra.mxu0 0
        %365 = vmatprep.subr.bf16.mxu0 0
        %366 = vmatpush1.bf16.msra.mxu0 0
        %367 = vmatprep.subr.bf16.mxu0 0
        %368 = vmatpush1.bf16.msra.mxu0 0
        %369 = vmatprep.subr.bf16.mxu0 0
        %370 = vmatpush1.bf16.msra.mxu0 0
        %371 = vmatprep.subr.bf16.mxu0 0
        %372 = vmatpush1.bf16.msra.mxu0 0
        %373 = vmatprep.subr.bf16.mxu0 0
        %374 = vmatpush1.bf16.msra.mxu0 0
        %375 = vmatprep.subr.bf16.mxu0 0
        %376 = vmatpush1.bf16.msra.mxu0 0
        %377 = vmatprep.subr.bf16.mxu0 0
        %378 = vmatpush1.bf16.msra.mxu0 0
        %379 = vmatprep.subr.bf16.mxu0 0
        %380 = vmatpush1.bf16.msra.mxu0 0
        %381 = vmatprep.subr.bf16.mxu0 0
        %382 = vmatpush1.bf16.msra.mxu0 0
        %383 = vmatprep.subr.bf16.mxu0 0
        %384 = vmatpush1.bf16.msra.mxu0 0
        %385 = vmatprep.subr.bf16.mxu0 0
        %386 = vmatpush1.bf16.msra.mxu0 0
        %387 = vmatprep.mubr.bf16.mxu0 0
        %388 = vmatmul.mubr.bf16.gmra.mrb[0].mxu0 %v344
        %v389 = vpop.f32.mrb[0].mxu0
        %v390 = vadd.f32 %v270, %v389
        %v391 = vpop.f32.mrb[0].mxu0
        %v392 = vadd.f32 %v274, %v391
        %v393 = vpop.f32.mrb[0].mxu0
        %v394 = vadd.f32 %v270, %v393
        %v395 = vpop.f32.mrb[0].mxu0
        %v396 = vadd.f32 %v274, %v395
        %397 = vmatprep.mubr.bf16.mxu0 0
        %398 = vmatmul.mubr.bf16.gmra.mrb[0].mxu0 %v347
        %v399 = vpop.f32.mrb[0].mxu0
        %v400 = vadd.f32 %v270, %v399
        %v401 = vpop.f32.mrb[0].mxu0
        %v402 = vadd.f32 %v274, %v401
        %v403 = vpop.f32.mrb[0].mxu0
        %v404 = vadd.f32 %v270, %v403
        %v405 = vpop.f32.mrb[0].mxu0
        %v406 = vadd.f32 %v274, %v405
        %407 = vmatprep.mubr.bf16.mxu0 0
        %408 = vmatmul.mubr.bf16.gmra.mrb[0].mxu0 %v350
        %v409 = vpop.f32.mrb[0].mxu0
        %v410 = vadd.f32 %v270, %v409
        %v411 = vpop.f32.mrb[0].mxu0
        %v412 = vadd.f32 %v274, %v411
        %v413 = vpop.f32.mrb[0].mxu0
        %v414 = vadd.f32 %v270, %v413
        %v415 = vpop.f32.mrb[0].mxu0
        %v416 = vadd.f32 %v274, %v415
        %417 = vmatprep.mubr.bf16.mxu0 0
        %418 = vmatmul.mubr.bf16.gmra.mrb[0].mxu0 %v353
        %v419 = vpop.f32.mrb[0].mxu0
        %v420 = vadd.f32 %v270, %v419
        %v421 = vpop.f32.mrb[0].mxu0
        %v422 = vadd.f32 %v274, %v421
        %v423 = vpop.f32.mrb[0].mxu0
        %v424 = vadd.f32 %v270, %v423
        %v425 = vpop.f32.mrb[0].mxu0
        %v426 = vadd.f32 %v274, %v425
        %427 = vdwg.mxu0
        %428 = vmatprep.subr.bf16.mxu0 0
        %429 = vmatpush1.bf16.msra.mxu0 %v332
        %430 = vmatprep.subr.bf16.mxu0 0
        %431 = vmatpush1.bf16.msra.mxu0 %v335
        %432 = vmatprep.subr.bf16.mxu0 0
        %433 = vmatpush1.bf16.msra.mxu0 0
        %434 = vmatprep.subr.bf16.mxu0 0
        %435 = vmatpush1.bf16.msra.mxu0 0
        %436 = vmatprep.subr.bf16.mxu0 0
        %437 = vmatpush1.bf16.msra.mxu0 0
        %438 = vmatprep.subr.bf16.mxu0 0
        %439 = vmatpush1.bf16.msra.mxu0 0
        %440 = vmatprep.subr.bf16.mxu0 0
        %441 = vmatpush1.bf16.msra.mxu0 0
        %442 = vmatprep.subr.bf16.mxu0 0
        %443 = vmatpush1.bf16.msra.mxu0 0
        %444 = vmatprep.subr.bf16.mxu0 0
        %445 = vmatpush1.bf16.msra.mxu0 0
        %446 = vmatprep.subr.bf16.mxu0 0
        %447 = vmatpush1.bf16.msra.mxu0 0
        %448 = vmatprep.subr.bf16.mxu0 0
        %449 = vmatpush1.bf16.msra.mxu0 0
        %450 = vmatprep.subr.bf16.mxu0 0
        %451 = vmatpush1.bf16.msra.mxu0 0
        %452 = vmatprep.subr.bf16.mxu0 0
        %453 = vmatpush1.bf16.msra.mxu0 0
        %454 = vmatprep.subr.bf16.mxu0 0
        %455 = vmatpush1.bf16.msra.mxu0 0
        %456 = vmatprep.subr.bf16.mxu0 0
        %457 = vmatpush1.bf16.msra.mxu0 0
        %458 = vmatprep.subr.bf16.mxu0 0
        %459 = vmatpush1.bf16.msra.mxu0 0
        %460 = vmatprep.mubr.bf16.mxu0 0
        %461 = vmatmul.mubr.bf16.gmra.mrb[0].mxu0 %v344
        %v462 = vpop.f32.mrb[0].mxu0
        %v463 = vadd.f32 %v278, %v462
        %v464 = vpop.f32.mrb[0].mxu0
        %v465 = vpop.f32.mrb[0].mxu0
        %v466 = vadd.f32 %v278, %v465
        %v467 = vpop.f32.mrb[0].mxu0
        %468 = vmatprep.mubr.bf16.mxu0 0
        %469 = vmatmul.mubr.bf16.gmra.mrb[0].mxu0 %v347
        %v470 = vpop.f32.mrb[0].mxu0
        %v471 = vadd.f32 %v278, %v470
        %v472 = vpop.f32.mrb[0].mxu0
        %v473 = vpop.f32.mrb[0].mxu0
        %v474 = vadd.f32 %v278, %v473
        %v475 = vpop.f32.mrb[0].mxu0
        %476 = vmatprep.mubr.bf16.mxu0 0
        %477 = vmatmul.mubr.bf16.gmra.mrb[0].mxu0 %v350
        %v478 = vpop.f32.mrb[0].mxu0
        %v479 = vadd.f32 %v278, %v478
        %v480 = vpop.f32.mrb[0].mxu0
        %v481 = vpop.f32.mrb[0].mxu0
        %v482 = vadd.f32 %v278, %v481
        %v483 = vpop.f32.mrb[0].mxu0
        %484 = vmatprep.mubr.bf16.mxu0 0
        %485 = vmatmul.mubr.bf16.gmra.mrb[0].mxu0 %v353
        %v486 = vpop.f32.mrb[0].mxu0
        %v487 = vadd.f32 %v278, %v486
        %v488 = vpop.f32.mrb[0].mxu0
        %v489 = vpop.f32.mrb[0].mxu0
        %v490 = vadd.f32 %v278, %v489
        %v491 = vpop.f32.mrb[0].mxu0
        %492 = vdwg.mxu0
        %v493 = vpack.c.bf16 %v394, %v390
        %v494 = vpack.c.bf16 %v396, %v392
        %v495 = vpack.c.bf16 %v466, %v463
        %v496 = vpack.c.bf16 %v404, %v400
        %v497 = vpack.c.bf16 %v406, %v402
        %v498 = vpack.c.bf16 %v474, %v471
        %v499 = vpack.c.bf16 %v414, %v410
        %v500 = vpack.c.bf16 %v416, %v412
        %v501 = vpack.c.bf16 %v482, %v479
        %v502 = vpack.c.bf16 %v424, %v420
        %v503 = vpack.c.bf16 %v426, %v422
        %v504 = vpack.c.bf16 %v490, %v487
        %505 = vst [vmem:[#allocation2] sm:$0xff] %v493
        %506 = vst [vmem:[#allocation2 + $0x8] sm:$0xff] %v496
        %507 = vst [vmem:[#allocation2 + $0x10] sm:$0xff] %v499
        %508 = vst [vmem:[#allocation2 + $0x18] sm:$0xff] %v502
        %509 = vst [vmem:[#allocation3] sm:$0xff] %v494
        %510 = vst [vmem:[#allocation3 + $0x8] sm:$0xff] %v497
        %511 = vst [vmem:[#allocation3 + $0x10] sm:$0xff] %v500
        %512 = vst [vmem:[#allocation3 + $0x18] sm:$0xff] %v503
        %513 = vst [vmem:[#allocation4] sm:$0xff] %v495
        %514 = vst [vmem:[#allocation4 + $0x8] sm:$0xff] %v498
        %515 = vst [vmem:[#allocation4 + $0x10] sm:$0xff] %v501
        %516 = vst [vmem:[#allocation4 + $0x18] sm:$0xff] %v504
        %s517 = scalar_lea.vmem %s241, 32
        %v518 = vld [vmem:[%s517] sm:$0xf]
        %v519 = vld [vmem:[%s517 + $0x4] sm:$0xf]
        %v520 = vld [vmem:[%s517 + $0x8] sm:$0xf]
        %v521 = vld [vmem:[%s517 + $0xc] sm:$0xf]
        %v522 = vld [vmem:[%s517 + $0x10] sm:$0xf]
        %v523 = vld [vmem:[%s517 + $0x14] sm:$0xf]
        %v524 = vld [vmem:[%s517 + $0x18] sm:$0xf]
        %v525 = vld [vmem:[%s517 + $0x1c] sm:$0xf]
        %v534 = vunpack.c.l.b16 %v518
        %v535 = vunpack.c.l.b16 %v519
        %v536 = vunpack.c.l.b16 %v520
        %v537 = vunpack.c.l.b16 %v521
        %v538 = vunpack.c.l.b16 %v522
        %v539 = vunpack.c.l.b16 %v523
        %v540 = vunpack.c.l.b16 %v524
        %v541 = vunpack.c.l.b16 %v525
        %v542 = vpack.c.b16 %v535, %v534
        %v543 = vpack.c.b16 %v537, %v536
        %v544 = vpack.c.b16 %v539, %v538
        %v545 = vpack.c.b16 %v541, %v540
        %v547 = vsel %vm342, %v542, 0
        %v550 = vsel %vm342, %v543, 0
        %v553 = vsel %vm342, %v544, 0
        %v556 = vsel %vm342, %v545, 0
        %558 = vmatprep.subr.bf16.mxu0 %v331
        %559 = vmatpush1.bf16.msra.mxu0 %v330
        %560 = vmatprep.subr.bf16.mxu0 %v334
        %561 = vmatpush1.bf16.msra.mxu0 %v333
        %562 = vmatprep.subr.bf16.mxu0 0
        %563 = vmatpush1.bf16.msra.mxu0 0
        %564 = vmatprep.subr.bf16.mxu0 0
        %565 = vmatpush1.bf16.msra.mxu0 0
        %566 = vmatprep.subr.bf16.mxu0 0
        %567 = vmatpush1.bf16.msra.mxu0 0
        %568 = vmatprep.subr.bf16.mxu0 0
        %569 = vmatpush1.bf16.msra.mxu0 0
        %570 = vmatprep.subr.bf16.mxu0 0
        %571 = vmatpush1.bf16.msra.mxu0 0
        %572 = vmatprep.subr.bf16.mxu0 0
        %573 = vmatpush1.bf16.msra.mxu0 0
        %574 = vmatprep.subr.bf16.mxu0 0
        %575 = vmatpush1.bf16.msra.mxu0 0
        %576 = vmatprep.subr.bf16.mxu0 0
        %577 = vmatpush1.bf16.msra.mxu0 0
        %578 = vmatprep.subr.bf16.mxu0 0
        %579 = vmatpush1.bf16.msra.mxu0 0
        %580 = vmatprep.subr.bf16.mxu0 0
        %581 = vmatpush1.bf16.msra.mxu0 0
        %582 = vmatprep.subr.bf16.mxu0 0
        %583 = vmatpush1.bf16.msra.mxu0 0
        %584 = vmatprep.subr.bf16.mxu0 0
        %585 = vmatpush1.bf16.msra.mxu0 0
        %586 = vmatprep.subr.bf16.mxu0 0
        %587 = vmatpush1.bf16.msra.mxu0 0
        %588 = vmatprep.subr.bf16.mxu0 0
        %589 = vmatpush1.bf16.msra.mxu0 0
        %590 = vmatprep.mubr.bf16.mxu0 0
        %591 = vmatmul.mubr.bf16.gmra.mrb[0].mxu0 %v547
        %v592 = vpop.f32.mrb[0].mxu0
        %v593 = vadd.f32 %v270, %v592
        %v594 = vpop.f32.mrb[0].mxu0
        %v595 = vadd.f32 %v274, %v594
        %v596 = vpop.f32.mrb[0].mxu0
        %v597 = vadd.f32 %v270, %v596
        %v598 = vpop.f32.mrb[0].mxu0
        %v599 = vadd.f32 %v274, %v598
        %600 = vmatprep.mubr.bf16.mxu0 0
        %601 = vmatmul.mubr.bf16.gmra.mrb[0].mxu0 %v550
        %v602 = vpop.f32.mrb[0].mxu0
        %v603 = vadd.f32 %v270, %v602
        %v604 = vpop.f32.mrb[0].mxu0
        %v605 = vadd.f32 %v274, %v604
        %v606 = vpop.f32.mrb[0].mxu0
        %v607 = vadd.f32 %v270, %v606
        %v608 = vpop.f32.mrb[0].mxu0
        %v609 = vadd.f32 %v274, %v608
        %610 = vmatprep.mubr.bf16.mxu0 0
        %611 = vmatmul.mubr.bf16.gmra.mrb[0].mxu0 %v553
        %v612 = vpop.f32.mrb[0].mxu0
        %v613 = vadd.f32 %v270, %v612
        %v614 = vpop.f32.mrb[0].mxu0
        %v615 = vadd.f32 %v274, %v614
        %v616 = vpop.f32.mrb[0].mxu0
        %v617 = vadd.f32 %v270, %v616
        %v618 = vpop.f32.mrb[0].mxu0
        %v619 = vadd.f32 %v274, %v618
        %620 = vmatprep.mubr.bf16.mxu0 0
        %621 = vmatmul.mubr.bf16.gmra.mrb[0].mxu0 %v556
        %v622 = vpop.f32.mrb[0].mxu0
        %v623 = vadd.f32 %v270, %v622
        %v624 = vpop.f32.mrb[0].mxu0
        %v625 = vadd.f32 %v274, %v624
        %v626 = vpop.f32.mrb[0].mxu0
        %v627 = vadd.f32 %v270, %v626
        %v628 = vpop.f32.mrb[0].mxu0
        %v629 = vadd.f32 %v274, %v628
        %630 = vdwg.mxu0
        %631 = vmatprep.subr.bf16.mxu0 0
        %632 = vmatpush1.bf16.msra.mxu0 %v332
        %633 = vmatprep.subr.bf16.mxu0 0
        %634 = vmatpush1.bf16.msra.mxu0 %v335
        %635 = vmatprep.subr.bf16.mxu0 0
        %636 = vmatpush1.bf16.msra.mxu0 0
        %637 = vmatprep.subr.bf16.mxu0 0
        %638 = vmatpush1.bf16.msra.mxu0 0
        %639 = vmatprep.subr.bf16.mxu0 0
        %640 = vmatpush1.bf16.msra.mxu0 0
        %641 = vmatprep.subr.bf16.mxu0 0
        %642 = vmatpush1.bf16.msra.mxu0 0
        %643 = vmatprep.subr.bf16.mxu0 0
        %644 = vmatpush1.bf16.msra.mxu0 0
        %645 = vmatprep.subr.bf16.mxu0 0
        %646 = vmatpush1.bf16.msra.mxu0 0
        %647 = vmatprep.subr.bf16.mxu0 0
        %648 = vmatpush1.bf16.msra.mxu0 0
        %649 = vmatprep.subr.bf16.mxu0 0
        %650 = vmatpush1.bf16.msra.mxu0 0
        %651 = vmatprep.subr.bf16.mxu0 0
        %652 = vmatpush1.bf16.msra.mxu0 0
        %653 = vmatprep.subr.bf16.mxu0 0
        %654 = vmatpush1.bf16.msra.mxu0 0
        %655 = vmatprep.subr.bf16.mxu0 0
        %656 = vmatpush1.bf16.msra.mxu0 0
        %657 = vmatprep.subr.bf16.mxu0 0
        %658 = vmatpush1.bf16.msra.mxu0 0
        %659 = vmatprep.subr.bf16.mxu0 0
        %660 = vmatpush1.bf16.msra.mxu0 0
        %661 = vmatprep.subr.bf16.mxu0 0
        %662 = vmatpush1.bf16.msra.mxu0 0
        %663 = vmatprep.mubr.bf16.mxu0 0
        %664 = vmatmul.mubr.bf16.gmra.mrb[0].mxu0 %v547
        %v665 = vpop.f32.mrb[0].mxu0
        %v666 = vadd.f32 %v278, %v665
        %v667 = vpop.f32.mrb[0].mxu0
        %v668 = vpop.f32.mrb[0].mxu0
        %v669 = vadd.f32 %v278, %v668
        %v670 = vpop.f32.mrb[0].mxu0
        %671 = vmatprep.mubr.bf16.mxu0 0
        %672 = vmatmul.mubr.bf16.gmra.mrb[0].mxu0 %v550
        %v673 = vpop.f32.mrb[0].mxu0
        %v674 = vadd.f32 %v278, %v673
        %v675 = vpop.f32.mrb[0].mxu0
        %v676 = vpop.f32.mrb[0].mxu0
        %v677 = vadd.f32 %v278, %v676
        %v678 = vpop.f32.mrb[0].mxu0
        %679 = vmatprep.mubr.bf16.mxu0 0
        %680 = vmatmul.mubr.bf16.gmra.mrb[0].mxu0 %v553
        %v681 = vpop.f32.mrb[0].mxu0
        %v682 = vadd.f32 %v278, %v681
        %v683 = vpop.f32.mrb[0].mxu0
        %v684 = vpop.f32.mrb[0].mxu0
        %v685 = vadd.f32 %v278, %v684
        %v686 = vpop.f32.mrb[0].mxu0
        %687 = vmatprep.mubr.bf16.mxu0 0
        %688 = vmatmul.mubr.bf16.gmra.mrb[0].mxu0 %v556
        %v689 = vpop.f32.mrb[0].mxu0
        %v690 = vadd.f32 %v278, %v689
        %v691 = vpop.f32.mrb[0].mxu0
        %v692 = vpop.f32.mrb[0].mxu0
        %v693 = vadd.f32 %v278, %v692
        %v694 = vpop.f32.mrb[0].mxu0
        %695 = vdwg.mxu0
        %v696 = vpack.c.bf16 %v597, %v593
        %v697 = vpack.c.bf16 %v599, %v595
        %v698 = vpack.c.bf16 %v669, %v666
        %v699 = vpack.c.bf16 %v607, %v603
        %v700 = vpack.c.bf16 %v609, %v605
        %v701 = vpack.c.bf16 %v677, %v674
        %v702 = vpack.c.bf16 %v617, %v613
        %v703 = vpack.c.bf16 %v619, %v615
        %v704 = vpack.c.bf16 %v685, %v682
        %v705 = vpack.c.bf16 %v627, %v623
        %v706 = vpack.c.bf16 %v629, %v625
        %v707 = vpack.c.bf16 %v693, %v690
        %s708 = scalar_lea.vmem [#allocation2], 32
        %709 = vst [vmem:[%s708] sm:$0xff] %v696
        %710 = vst [vmem:[%s708 + $0x8] sm:$0xff] %v699
        %711 = vst [vmem:[%s708 + $0x10] sm:$0xff] %v702
        %712 = vst [vmem:[%s708 + $0x18] sm:$0xff] %v705
        %v713 = vld [vmem:[#allocation3] sm:$0xff]
        %v714 = vld [vmem:[#allocation3 + $0x8] sm:$0xff]
        %v715 = vld [vmem:[#allocation3 + $0x10] sm:$0xff]
        %v716 = vld [vmem:[#allocation3 + $0x18] sm:$0xff]
        %v717 = vmax.bf16 %v713, %v697
        %v718 = vmax.bf16 %v714, %v700
        %v719 = vmax.bf16 %v715, %v703
        %v720 = vmax.bf16 %v716, %v706
        %721 = vst [vmem:[#allocation3] sm:$0xff] %v717
        %722 = vst [vmem:[#allocation3 + $0x8] sm:$0xff] %v718
        %723 = vst [vmem:[#allocation3 + $0x10] sm:$0xff] %v719
        %724 = vst [vmem:[#allocation3 + $0x18] sm:$0xff] %v720
        %v725 = vld [vmem:[#allocation4] sm:$0xff]
        %v726 = vld [vmem:[#allocation4 + $0x8] sm:$0xff]
        %v727 = vld [vmem:[#allocation4 + $0x10] sm:$0xff]
        %v728 = vld [vmem:[#allocation4 + $0x18] sm:$0xff]
        %v729 = vmax.bf16 %v725, %v698
        %v730 = vmax.bf16 %v726, %v701
        %v731 = vmax.bf16 %v727, %v704
        %v732 = vmax.bf16 %v728, %v707
        %733 = vst [vmem:[#allocation4] sm:$0xff] %v729
        %734 = vst [vmem:[#allocation4 + $0x8] sm:$0xff] %v730
        %735 = vst [vmem:[#allocation4 + $0x10] sm:$0xff] %v731
        %736 = vst [vmem:[#allocation4 + $0x18] sm:$0xff] %v732
        %s737 = scalar_lea.vmem %s241, 64
        %v738 = vld [vmem:[%s737] sm:$0xf]
        %v739 = vld [vmem:[%s737 + $0x4] sm:$0xf]
        %v740 = vld [vmem:[%s737 + $0x8] sm:$0xf]
        %v741 = vld [vmem:[%s737 + $0xc] sm:$0xf]
        %v742 = vld [vmem:[%s737 + $0x10] sm:$0xf]
        %v743 = vld [vmem:[%s737 + $0x14] sm:$0xf]
        %v744 = vld [vmem:[%s737 + $0x18] sm:$0xf]
        %v745 = vld [vmem:[%s737 + $0x1c] sm:$0xf]
        %v754 = vunpack.c.l.b16 %v738
        %v755 = vunpack.c.l.b16 %v739
        %v756 = vunpack.c.l.b16 %v740
        %v757 = vunpack.c.l.b16 %v741
        %v758 = vunpack.c.l.b16 %v742
        %v759 = vunpack.c.l.b16 %v743
        %v760 = vunpack.c.l.b16 %v744
        %v761 = vunpack.c.l.b16 %v745
        %v762 = vpack.c.b16 %v755, %v754
        %v763 = vpack.c.b16 %v757, %v756
        %v764 = vpack.c.b16 %v759, %v758
        %v765 = vpack.c.b16 %v761, %v760
        %v767 = vsel %vm342, %v762, 0
        %v770 = vsel %vm342, %v763, 0
        %v773 = vsel %vm342, %v764, 0
        %v776 = vsel %vm342, %v765, 0
        %778 = vmatprep.subr.bf16.mxu0 %v331
        %779 = vmatpush1.bf16.msra.mxu0 %v330
        %780 = vmatprep.subr.bf16.mxu0 %v334
        %781 = vmatpush1.bf16.msra.mxu0 %v333
        %782 = vmatprep.subr.bf16.mxu0 0
        %783 = vmatpush1.bf16.msra.mxu0 0
        %784 = vmatprep.subr.bf16.mxu0 0
        %785 = vmatpush1.bf16.msra.mxu0 0
        %786 = vmatprep.subr.bf16.mxu0 0
        %787 = vmatpush1.bf16.msra.mxu0 0
        %788 = vmatprep.subr.bf16.mxu0 0
        %789 = vmatpush1.bf16.msra.mxu0 0
        %790 = vmatprep.subr.bf16.mxu0 0
        %791 = vmatpush1.bf16.msra.mxu0 0
        %792 = vmatprep.subr.bf16.mxu0 0
        %793 = vmatpush1.bf16.msra.mxu0 0
        %794 = vmatprep.subr.bf16.mxu0 0
        %795 = vmatpush1.bf16.msra.mxu0 0
        %796 = vmatprep.subr.bf16.mxu0 0
        %797 = vmatpush1.bf16.msra.mxu0 0
        %798 = vmatprep.subr.bf16.mxu0 0
        %799 = vmatpush1.bf16.msra.mxu0 0
        %800 = vmatprep.subr.bf16.mxu0 0
        %801 = vmatpush1.bf16.msra.mxu0 0
        %802 = vmatprep.subr.bf16.mxu0 0
        %803 = vmatpush1.bf16.msra.mxu0 0
        %804 = vmatprep.subr.bf16.mxu0 0
        %805 = vmatpush1.bf16.msra.mxu0 0
        %806 = vmatprep.subr.bf16.mxu0 0
        %807 = vmatpush1.bf16.msra.mxu0 0
        %808 = vmatprep.subr.bf16.mxu0 0
        %809 = vmatpush1.bf16.msra.mxu0 0
        %810 = vmatprep.mubr.bf16.mxu0 0
        %811 = vmatmul.mubr.bf16.gmra.mrb[0].mxu0 %v767
        %v812 = vpop.f32.mrb[0].mxu0
        %v813 = vadd.f32 %v270, %v812
        %v814 = vpop.f32.mrb[0].mxu0
        %v815 = vadd.f32 %v274, %v814
        %v816 = vpop.f32.mrb[0].mxu0
        %v817 = vadd.f32 %v270, %v816
        %v818 = vpop.f32.mrb[0].mxu0
        %v819 = vadd.f32 %v274, %v818
        %820 = vmatprep.mubr.bf16.mxu0 0
        %821 = vmatmul.mubr.bf16.gmra.mrb[0].mxu0 %v770
        %v822 = vpop.f32.mrb[0].mxu0
        %v823 = vadd.f32 %v270, %v822
        %v824 = vpop.f32.mrb[0].mxu0
        %v825 = vadd.f32 %v274, %v824
        %v826 = vpop.f32.mrb[0].mxu0
        %v827 = vadd.f32 %v270, %v826
        %v828 = vpop.f32.mrb[0].mxu0
        %v829 = vadd.f32 %v274, %v828
        %830 = vmatprep.mubr.bf16.mxu0 0
        %831 = vmatmul.mubr.bf16.gmra.mrb[0].mxu0 %v773
        %v832 = vpop.f32.mrb[0].mxu0
        %v833 = vadd.f32 %v270, %v832
        %v834 = vpop.f32.mrb[0].mxu0
        %v835 = vadd.f32 %v274, %v834
        %v836 = vpop.f32.mrb[0].mxu0
        %v837 = vadd.f32 %v270, %v836
        %v838 = vpop.f32.mrb[0].mxu0
        %v839 = vadd.f32 %v274, %v838
        %840 = vmatprep.mubr.bf16.mxu0 0
        %841 = vmatmul.mubr.bf16.gmra.mrb[0].mxu0 %v776
        %v842 = vpop.f32.mrb[0].mxu0
        %v843 = vadd.f32 %v270, %v842
        %v844 = vpop.f32.mrb[0].mxu0
        %v845 = vadd.f32 %v274, %v844
        %v846 = vpop.f32.mrb[0].mxu0
        %v847 = vadd.f32 %v270, %v846
        %v848 = vpop.f32.mrb[0].mxu0
        %v849 = vadd.f32 %v274, %v848
        %850 = vdwg.mxu0
        %851 = vmatprep.subr.bf16.mxu0 0
        %852 = vmatpush1.bf16.msra.mxu0 %v332
        %853 = vmatprep.subr.bf16.mxu0 0
        %854 = vmatpush1.bf16.msra.mxu0 %v335
        %855 = vmatprep.subr.bf16.mxu0 0
        %856 = vmatpush1.bf16.msra.mxu0 0
        %857 = vmatprep.subr.bf16.mxu0 0
        %858 = vmatpush1.bf16.msra.mxu0 0
        %859 = vmatprep.subr.bf16.mxu0 0
        %860 = vmatpush1.bf16.msra.mxu0 0
        %861 = vmatprep.subr.bf16.mxu0 0
        %862 = vmatpush1.bf16.msra.mxu0 0
        %863 = vmatprep.subr.bf16.mxu0 0
        %864 = vmatpush1.bf16.msra.mxu0 0
        %865 = vmatprep.subr.bf16.mxu0 0
        %866 = vmatpush1.bf16.msra.mxu0 0
        %867 = vmatprep.subr.bf16.mxu0 0
        %868 = vmatpush1.bf16.msra.mxu0 0
        %869 = vmatprep.subr.bf16.mxu0 0
        %870 = vmatpush1.bf16.msra.mxu0 0
        %871 = vmatprep.subr.bf16.mxu0 0
        %872 = vmatpush1.bf16.msra.mxu0 0
        %873 = vmatprep.subr.bf16.mxu0 0
        %874 = vmatpush1.bf16.msra.mxu0 0
        %875 = vmatprep.subr.bf16.mxu0 0
        %876 = vmatpush1.bf16.msra.mxu0 0
        %877 = vmatprep.subr.bf16.mxu0 0
        %878 = vmatpush1.bf16.msra.mxu0 0
        %879 = vmatprep.subr.bf16.mxu0 0
        %880 = vmatpush1.bf16.msra.mxu0 0
        %881 = vmatprep.subr.bf16.mxu0 0
        %882 = vmatpush1.bf16.msra.mxu0 0
        %883 = vmatprep.mubr.bf16.mxu0 0
        %884 = vmatmul.mubr.bf16.gmra.mrb[0].mxu0 %v767
        %v885 = vpop.f32.mrb[0].mxu0
        %v886 = vadd.f32 %v278, %v885
        %v887 = vpop.f32.mrb[0].mxu0
        %v888 = vpop.f32.mrb[0].mxu0
        %v889 = vadd.f32 %v278, %v888
        %v890 = vpop.f32.mrb[0].mxu0
        %891 = vmatprep.mubr.bf16.mxu0 0
        %892 = vmatmul.mubr.bf16.gmra.mrb[0].mxu0 %v770
        %v893 = vpop.f32.mrb[0].mxu0
        %v894 = vadd.f32 %v278, %v893
        %v895 = vpop.f32.mrb[0].mxu0
        %v896 = vpop.f32.mrb[0].mxu0
        %v897 = vadd.f32 %v278, %v896
        %v898 = vpop.f32.mrb[0].mxu0
        %899 = vmatprep.mubr.bf16.mxu0 0
        %900 = vmatmul.mubr.bf16.gmra.mrb[0].mxu0 %v773
        %v901 = vpop.f32.mrb[0].mxu0
        %v902 = vadd.f32 %v278, %v901
        %v903 = vpop.f32.mrb[0].mxu0
        %v904 = vpop.f32.mrb[0].mxu0
        %v905 = vadd.f32 %v278, %v904
        %v906 = vpop.f32.mrb[0].mxu0
        %907 = vmatprep.mubr.bf16.mxu0 0
        %908 = vmatmul.mubr.bf16.gmra.mrb[0].mxu0 %v776
        %v909 = vpop.f32.mrb[0].mxu0
        %v910 = vadd.f32 %v278, %v909
        %v911 = vpop.f32.mrb[0].mxu0
        %v912 = vpop.f32.mrb[0].mxu0
        %v913 = vadd.f32 %v278, %v912
        %v914 = vpop.f32.mrb[0].mxu0
        %915 = vdwg.mxu0
        %v916 = vpack.c.bf16 %v817, %v813
        %v917 = vpack.c.bf16 %v819, %v815
        %v918 = vpack.c.bf16 %v889, %v886
        %v919 = vpack.c.bf16 %v827, %v823
        %v920 = vpack.c.bf16 %v829, %v825
        %v921 = vpack.c.bf16 %v897, %v894
        %v922 = vpack.c.bf16 %v837, %v833
        %v923 = vpack.c.bf16 %v839, %v835
        %v924 = vpack.c.bf16 %v905, %v902
        %v925 = vpack.c.bf16 %v847, %v843
        %v926 = vpack.c.bf16 %v849, %v845
        %v927 = vpack.c.bf16 %v913, %v910
        %s928 = scalar_lea.vmem [#allocation2], 64
        %929 = vst [vmem:[%s928] sm:$0xff] %v916
        %930 = vst [vmem:[%s928 + $0x8] sm:$0xff] %v919
        %931 = vst [vmem:[%s928 + $0x10] sm:$0xff] %v922
        %932 = vst [vmem:[%s928 + $0x18] sm:$0xff] %v925
        %v933 = vld [vmem:[#allocation3] sm:$0xff]
        %v934 = vld [vmem:[#allocation3 + $0x8] sm:$0xff]
        %v935 = vld [vmem:[#allocation3 + $0x10] sm:$0xff]
        %v936 = vld [vmem:[#allocation3 + $0x18] sm:$0xff]
        %v937 = vmax.bf16 %v933, %v917
        %v938 = vmax.bf16 %v934, %v920
        %v939 = vmax.bf16 %v935, %v923
        %v940 = vmax.bf16 %v936, %v926
        %941 = vst [vmem:[#allocation3] sm:$0xff] %v937
        %942 = vst [vmem:[#allocation3 + $0x8] sm:$0xff] %v938
        %943 = vst [vmem:[#allocation3 + $0x10] sm:$0xff] %v939
        %944 = vst [vmem:[#allocation3 + $0x18] sm:$0xff] %v940
        %v945 = vld [vmem:[#allocation4] sm:$0xff]
        %v946 = vld [vmem:[#allocation4 + $0x8] sm:$0xff]
        %v947 = vld [vmem:[#allocation4 + $0x10] sm:$0xff]
        %v948 = vld [vmem:[#allocation4 + $0x18] sm:$0xff]
        %v949 = vmax.bf16 %v945, %v918
        %v950 = vmax.bf16 %v946, %v921
        %v951 = vmax.bf16 %v947, %v924
        %v952 = vmax.bf16 %v948, %v927
        %953 = vst [vmem:[#allocation4] sm:$0xff] %v949
        %954 = vst [vmem:[#allocation4 + $0x8] sm:$0xff] %v950
        %955 = vst [vmem:[#allocation4 + $0x10] sm:$0xff] %v951
        %956 = vst [vmem:[#allocation4 + $0x18] sm:$0xff] %v952
        %s957 = scalar_lea.vmem %s241, 96
        %v958 = vld [vmem:[%s957] sm:$0xf]
        %v959 = vld [vmem:[%s957 + $0x4] sm:$0xf]
        %v960 = vld [vmem:[%s957 + $0x8] sm:$0xf]
        %v961 = vld [vmem:[%s957 + $0xc] sm:$0xf]
        %v962 = vld [vmem:[%s957 + $0x10] sm:$0xf]
        %v963 = vld [vmem:[%s957 + $0x14] sm:$0xf]
        %v964 = vld [vmem:[%s957 + $0x18] sm:$0xf]
        %v965 = vld [vmem:[%s957 + $0x1c] sm:$0xf]
        %v974 = vunpack.c.l.b16 %v958
        %v975 = vunpack.c.l.b16 %v959
        %v976 = vunpack.c.l.b16 %v960
        %v977 = vunpack.c.l.b16 %v961
        %v978 = vunpack.c.l.b16 %v962
        %v979 = vunpack.c.l.b16 %v963
        %v980 = vunpack.c.l.b16 %v964
        %v981 = vunpack.c.l.b16 %v965
        %v982 = vpack.c.b16 %v975, %v974
        %v983 = vpack.c.b16 %v977, %v976
        %v984 = vpack.c.b16 %v979, %v978
        %v985 = vpack.c.b16 %v981, %v980
        %v987 = vsel %vm342, %v982, 0
        %v990 = vsel %vm342, %v983, 0
        %v993 = vsel %vm342, %v984, 0
        %v996 = vsel %vm342, %v985, 0
        %998 = vmatprep.subr.bf16.mxu0 %v331
        %999 = vmatpush1.bf16.msra.mxu0 %v330
        %1000 = vmatprep.subr.bf16.mxu0 %v334
        %1001 = vmatpush1.bf16.msra.mxu0 %v333
        %1002 = vmatprep.subr.bf16.mxu0 0
        %1003 = vmatpush1.bf16.msra.mxu0 0
        %1004 = vmatprep.subr.bf16.mxu0 0
        %1005 = vmatpush1.bf16.msra.mxu0 0
        %1006 = vmatprep.subr.bf16.mxu0 0
        %1007 = vmatpush1.bf16.msra.mxu0 0
        %1008 = vmatprep.subr.bf16.mxu0 0
        %1009 = vmatpush1.bf16.msra.mxu0 0
        %1010 = vmatprep.subr.bf16.mxu0 0
        %1011 = vmatpush1.bf16.msra.mxu0 0
        %1012 = vmatprep.subr.bf16.mxu0 0
        %1013 = vmatpush1.bf16.msra.mxu0 0
        %1014 = vmatprep.subr.bf16.mxu0 0
        %1015 = vmatpush1.bf16.msra.mxu0 0
        %1016 = vmatprep.subr.bf16.mxu0 0
        %1017 = vmatpush1.bf16.msra.mxu0 0
        %1018 = vmatprep.subr.bf16.mxu0 0
        %1019 = vmatpush1.bf16.msra.mxu0 0
        %1020 = vmatprep.subr.bf16.mxu0 0
        %1021 = vmatpush1.bf16.msra.mxu0 0
        %1022 = vmatprep.subr.bf16.mxu0 0
        %1023 = vmatpush1.bf16.msra.mxu0 0
        %1024 = vmatprep.subr.bf16.mxu0 0
        %1025 = vmatpush1.bf16.msra.mxu0 0
        %1026 = vmatprep.subr.bf16.mxu0 0
        %1027 = vmatpush1.bf16.msra.mxu0 0
        %1028 = vmatprep.subr.bf16.mxu0 0
        %1029 = vmatpush1.bf16.msra.mxu0 0
        %1030 = vmatprep.mubr.bf16.mxu0 0
        %1031 = vmatmul.mubr.bf16.gmra.mrb[0].mxu0 %v987
        %v1032 = vpop.f32.mrb[0].mxu0
        %v1033 = vadd.f32 %v270, %v1032
        %v1034 = vpop.f32.mrb[0].mxu0
        %v1035 = vadd.f32 %v274, %v1034
        %v1036 = vpop.f32.mrb[0].mxu0
        %v1037 = vadd.f32 %v270, %v1036
        %v1038 = vpop.f32.mrb[0].mxu0
        %v1039 = vadd.f32 %v274, %v1038
        %1040 = vmatprep.mubr.bf16.mxu0 0
        %1041 = vmatmul.mubr.bf16.gmra.mrb[0].mxu0 %v990
        %v1042 = vpop.f32.mrb[0].mxu0
        %v1043 = vadd.f32 %v270, %v1042
        %v1044 = vpop.f32.mrb[0].mxu0
        %v1045 = vadd.f32 %v274, %v1044
        %v1046 = vpop.f32.mrb[0].mxu0
        %v1047 = vadd.f32 %v270, %v1046
        %v1048 = vpop.f32.mrb[0].mxu0
        %v1049 = vadd.f32 %v274, %v1048
        %1050 = vmatprep.mubr.bf16.mxu0 0
        %1051 = vmatmul.mubr.bf16.gmra.mrb[0].mxu0 %v993
        %v1052 = vpop.f32.mrb[0].mxu0
        %v1053 = vadd.f32 %v270, %v1052
        %v1054 = vpop.f32.mrb[0].mxu0
        %v1055 = vadd.f32 %v274, %v1054
        %v1056 = vpop.f32.mrb[0].mxu0
        %v1057 = vadd.f32 %v270, %v1056
        %v1058 = vpop.f32.mrb[0].mxu0
        %v1059 = vadd.f32 %v274, %v1058
        %1060 = vmatprep.mubr.bf16.mxu0 0
        %1061 = vmatmul.mubr.bf16.gmra.mrb[0].mxu0 %v996
        %v1062 = vpop.f32.mrb[0].mxu0
        %v1063 = vadd.f32 %v270, %v1062
        %v1064 = vpop.f32.mrb[0].mxu0
        %v1065 = vadd.f32 %v274, %v1064
        %v1066 = vpop.f32.mrb[0].mxu0
        %v1067 = vadd.f32 %v270, %v1066
        %v1068 = vpop.f32.mrb[0].mxu0
        %v1069 = vadd.f32 %v274, %v1068
        %1070 = vdwg.mxu0
        %1071 = vmatprep.subr.bf16.mxu0 0
        %1072 = vmatpush1.bf16.msra.mxu0 %v332
        %1073 = vmatprep.subr.bf16.mxu0 0
        %1074 = vmatpush1.bf16.msra.mxu0 %v335
        %1075 = vmatprep.subr.bf16.mxu0 0
        %1076 = vmatpush1.bf16.msra.mxu0 0
        %1077 = vmatprep.subr.bf16.mxu0 0
        %1078 = vmatpush1.bf16.msra.mxu0 0
        %1079 = vmatprep.subr.bf16.mxu0 0
        %1080 = vmatpush1.bf16.msra.mxu0 0
        %1081 = vmatprep.subr.bf16.mxu0 0
        %1082 = vmatpush1.bf16.msra.mxu0 0
        %1083 = vmatprep.subr.bf16.mxu0 0
        %1084 = vmatpush1.bf16.msra.mxu0 0
        %1085 = vmatprep.subr.bf16.mxu0 0
        %1086 = vmatpush1.bf16.msra.mxu0 0
        %1087 = vmatprep.subr.bf16.mxu0 0
        %1088 = vmatpush1.bf16.msra.mxu0 0
        %1089 = vmatprep.subr.bf16.mxu0 0
        %1090 = vmatpush1.bf16.msra.mxu0 0
        %1091 = vmatprep.subr.bf16.mxu0 0
        %1092 = vmatpush1.bf16.msra.mxu0 0
        %1093 = vmatprep.subr.bf16.mxu0 0
        %1094 = vmatpush1.bf16.msra.mxu0 0
        %1095 = vmatprep.subr.bf16.mxu0 0
        %1096 = vmatpush1.bf16.msra.mxu0 0
        %1097 = vmatprep.subr.bf16.mxu0 0
        %1098 = vmatpush1.bf16.msra.mxu0 0
        %1099 = vmatprep.subr.bf16.mxu0 0
        %1100 = vmatpush1.bf16.msra.mxu0 0
        %1101 = vmatprep.subr.bf16.mxu0 0
        %1102 = vmatpush1.bf16.msra.mxu0 0
        %1103 = vmatprep.mubr.bf16.mxu0 0
        %1104 = vmatmul.mubr.bf16.gmra.mrb[0].mxu0 %v987
        %v1105 = vpop.f32.mrb[0].mxu0
        %v1106 = vadd.f32 %v278, %v1105
        %v1107 = vpop.f32.mrb[0].mxu0
        %v1108 = vpop.f32.mrb[0].mxu0
        %v1109 = vadd.f32 %v278, %v1108
        %v1110 = vpop.f32.mrb[0].mxu0
        %1111 = vmatprep.mubr.bf16.mxu0 0
        %1112 = vmatmul.mubr.bf16.gmra.mrb[0].mxu0 %v990
        %v1113 = vpop.f32.mrb[0].mxu0
        %v1114 = vadd.f32 %v278, %v1113
        %v1115 = vpop.f32.mrb[0].mxu0
        %v1116 = vpop.f32.mrb[0].mxu0
        %v1117 = vadd.f32 %v278, %v1116
        %v1118 = vpop.f32.mrb[0].mxu0
        %1119 = vmatprep.mubr.bf16.mxu0 0
        %1120 = vmatmul.mubr.bf16.gmra.mrb[0].mxu0 %v993
        %v1121 = vpop.f32.mrb[0].mxu0
        %v1122 = vadd.f32 %v278, %v1121
        %v1123 = vpop.f32.mrb[0].mxu0
        %v1124 = vpop.f32.mrb[0].mxu0
        %v1125 = vadd.f32 %v278, %v1124
        %v1126 = vpop.f32.mrb[0].mxu0
        %1127 = vmatprep.mubr.bf16.mxu0 0
        %1128 = vmatmul.mubr.bf16.gmra.mrb[0].mxu0 %v996
        %v1129 = vpop.f32.mrb[0].mxu0
        %v1130 = vadd.f32 %v278, %v1129
        %v1131 = vpop.f32.mrb[0].mxu0
        %v1132 = vpop.f32.mrb[0].mxu0
        %v1133 = vadd.f32 %v278, %v1132
        %v1134 = vpop.f32.mrb[0].mxu0
        %1135 = vdwg.mxu0
        %v1136 = vpack.c.bf16 %v1037, %v1033
        %v1137 = vpack.c.bf16 %v1039, %v1035
        %v1138 = vpack.c.bf16 %v1109, %v1106
        %v1139 = vpack.c.bf16 %v1047, %v1043
        %v1140 = vpack.c.bf16 %v1049, %v1045
        %v1141 = vpack.c.bf16 %v1117, %v1114
        %v1142 = vpack.c.bf16 %v1057, %v1053
        %v1143 = vpack.c.bf16 %v1059, %v1055
        %v1144 = vpack.c.bf16 %v1125, %v1122
        %v1145 = vpack.c.bf16 %v1067, %v1063
        %v1146 = vpack.c.bf16 %v1069, %v1065
        %v1147 = vpack.c.bf16 %v1133, %v1130
        %s1148 = scalar_lea.vmem [#allocation2], 96
        %1149 = vst [vmem:[%s1148] sm:$0xff] %v1136
        %1150 = vst [vmem:[%s1148 + $0x8] sm:$0xff] %v1139
        %1151 = vst [vmem:[%s1148 + $0x10] sm:$0xff] %v1142
        %1152 = vst [vmem:[%s1148 + $0x18] sm:$0xff] %v1145
        %v1153 = vld [vmem:[#allocation3] sm:$0xff]
        %v1154 = vld [vmem:[#allocation3 + $0x8] sm:$0xff]
        %v1155 = vld [vmem:[#allocation3 + $0x10] sm:$0xff]
        %v1156 = vld [vmem:[#allocation3 + $0x18] sm:$0xff]
        %v1157 = vmax.bf16 %v1153, %v1137
        %v1158 = vmax.bf16 %v1154, %v1140
        %v1159 = vmax.bf16 %v1155, %v1143
        %v1160 = vmax.bf16 %v1156, %v1146
        %1161 = vst [vmem:[#allocation3] sm:$0xff] %v1157
        %1162 = vst [vmem:[#allocation3 + $0x8] sm:$0xff] %v1158
        %1163 = vst [vmem:[#allocation3 + $0x10] sm:$0xff] %v1159
        %1164 = vst [vmem:[#allocation3 + $0x18] sm:$0xff] %v1160
        %v1165 = vld [vmem:[#allocation4] sm:$0xff]
        %v1166 = vld [vmem:[#allocation4 + $0x8] sm:$0xff]
        %v1167 = vld [vmem:[#allocation4 + $0x10] sm:$0xff]
        %v1168 = vld [vmem:[#allocation4 + $0x18] sm:$0xff]
        %v1169 = vmax.bf16 %v1165, %v1138
        %v1170 = vmax.bf16 %v1166, %v1141
        %v1171 = vmax.bf16 %v1167, %v1144
        %v1172 = vmax.bf16 %v1168, %v1147
        %1173 = vst [vmem:[#allocation4] sm:$0xff] %v1169
        %1174 = vst [vmem:[#allocation4 + $0x8] sm:$0xff] %v1170
        %1175 = vst [vmem:[#allocation4 + $0x10] sm:$0xff] %v1171
        %1176 = vst [vmem:[#allocation4 + $0x18] sm:$0xff] %v1172
      $region44: #{tpu_custom_call.1} parent=39 // pred_fallthru
        _
      %s1177 = smul.u32 %s21, 4
      %s1178 = smul.addr %s1177, 8
      %s1179 = scalar_lea.vmem [#allocation2], %s1178
      %v1180 = vld [vmem:[%s1179] sm:$0xff]
      %v1181 = vld [vmem:[%s1179 + $0x8] sm:$0xff]
      %v1182 = vld [vmem:[%s1179 + $0x10] sm:$0xff]
      %v1183 = vld [vmem:[%s1179 + $0x18] sm:$0xff]
      %v1184 = vld [vmem:[#allocation3] sm:$0xff]
      %v1185 = vld [vmem:[#allocation3 + $0x8] sm:$0xff]
      %v1186 = vld [vmem:[#allocation3 + $0x10] sm:$0xff]
      %v1187 = vld [vmem:[#allocation3 + $0x18] sm:$0xff]
      %1188 = vmatprep.subr.bf16.mxu0 0
      %1189 = vmatpush1.bf16.xpose.msra.mxu0 %v1184
      %1190 = vmatprep.subr.bf16.mxu0 0
      %1191 = vmatpush1.bf16.xpose.msra.mxu0 %v1185
      %1192 = vmatprep.subr.bf16.mxu0 0
      %1193 = vmatpush1.bf16.xpose.msra.mxu0 %v1186
      %1194 = vmatprep.subr.bf16.mxu0 0
      %1195 = vmatpush1.bf16.xpose.msra.mxu0 %v1187
      %1196 = vmatprep.subr.bf16.mxu0 0
      %1197 = vmatpush1.bf16.xpose.msra.mxu0 0
      %1198 = vmatprep.subr.bf16.mxu0 0
      %1199 = vmatpush1.bf16.xpose.msra.mxu0 0
      %1200 = vmatprep.subr.bf16.mxu0 0
      %1201 = vmatpush1.bf16.xpose.msra.mxu0 0
      %1202 = vmatprep.subr.bf16.mxu0 0
      %1203 = vmatpush1.bf16.xpose.msra.mxu0 0
      %1204 = vmatprep.subr.bf16.mxu0 0
      %1205 = vmatpush1.bf16.xpose.msra.mxu0 0
      %1206 = vmatprep.subr.bf16.mxu0 0
      %1207 = vmatpush1.bf16.xpose.msra.mxu0 0
      %1208 = vmatprep.subr.bf16.mxu0 0
      %1209 = vmatpush1.bf16.xpose.msra.mxu0 0
      %1210 = vmatprep.subr.bf16.mxu0 0
      %1211 = vmatpush1.bf16.xpose.msra.mxu0 0
      %1212 = vmatprep.subr.bf16.mxu0 0
      %1213 = vmatpush1.bf16.xpose.msra.mxu0 0
      %1214 = vmatprep.subr.bf16.mxu0 0
      %1215 = vmatpush1.bf16.xpose.msra.mxu0 0
      %1216 = vmatprep.subr.bf16.mxu0 0
      %1217 = vmatpush1.bf16.xpose.msra.mxu0 0
      %1218 = vmatprep.subr.bf16.mxu0 0
      %1219 = vmatpush1.bf16.xpose.msra.mxu0 0
      %1220 = vmatprep.mubr.bf16.mxu0 0
      %1221 = vmatmul.mubr.bf16.gmra.mrb[0].mxu0 %v1180
      %v1222 = vpop.f32.mrb[0].mxu0
      %v1223 = vadd.f32 0.0, %v1222
      %v1224 = vpop.f32.mrb[0].mxu0
      %v1225 = vpop.f32.mrb[0].mxu0
      %v1226 = vadd.f32 0.0, %v1225
      %v1227 = vpop.f32.mrb[0].mxu0
      %1228 = vmatprep.mubr.bf16.mxu0 0
      %1229 = vmatmul.mubr.bf16.gmra.mrb[0].mxu0 %v1181
      %v1230 = vpop.f32.mrb[0].mxu0
      %v1231 = vadd.f32 0.0, %v1230
      %v1232 = vpop.f32.mrb[0].mxu0
      %v1233 = vpop.f32.mrb[0].mxu0
      %v1234 = vadd.f32 0.0, %v1233
      %v1235 = vpop.f32.mrb[0].mxu0
      %1236 = vmatprep.mubr.bf16.mxu0 0
      %1237 = vmatmul.mubr.bf16.gmra.mrb[0].mxu0 %v1182
      %v1238 = vpop.f32.mrb[0].mxu0
      %v1239 = vadd.f32 0.0, %v1238
      %v1240 = vpop.f32.mrb[0].mxu0
      %v1241 = vpop.f32.mrb[0].mxu0
      %v1242 = vadd.f32 0.0, %v1241
      %v1243 = vpop.f32.mrb[0].mxu0
      %1244 = vmatprep.mubr.bf16.mxu0 0
      %1245 = vmatmul.mubr.bf16.gmra.mrb[0].mxu0 %v1183
      %v1246 = vpop.f32.mrb[0].mxu0
      %v1247 = vadd.f32 0.0, %v1246
      %v1248 = vpop.f32.mrb[0].mxu0
      %v1249 = vpop.f32.mrb[0].mxu0
      %v1250 = vadd.f32 0.0, %v1249
      %v1251 = vpop.f32.mrb[0].mxu0
      %1252 = vdwg.mxu0
      %v1253 = vpack.c.bf16 %v1226, %v1223
      %v1254 = vpack.c.bf16 %v1234, %v1231
      %v1255 = vpack.c.bf16 %v1242, %v1239
      %v1256 = vpack.c.bf16 %v1250, %v1247
      %v1257 = vld [vmem:[#allocation4] sm:$0xff]
      %v1258 = vld [vmem:[#allocation4 + $0x8] sm:$0xff]
      %v1259 = vld [vmem:[#allocation4 + $0x10] sm:$0xff]
      %v1260 = vld [vmem:[#allocation4 + $0x18] sm:$0xff]
      %vm1261 = vcmask 523264
      %v1263 = vsel %vm1261, %v1253, 0
      %v1266 = vsel %vm1261, %v1254, 0
      %v1269 = vsel %vm1261, %v1255, 0
      %v1272 = vsel %vm1261, %v1256, 0
      %1274 = vmatprep.subr.bf16.mxu0 0
      %1275 = vmatpush1.bf16.msra.mxu0 %v1257
      %1276 = vmatprep.subr.bf16.mxu0 0
      %1277 = vmatpush1.bf16.msra.mxu0 %v1258
      %1278 = vmatprep.subr.bf16.mxu0 0
      %1279 = vmatpush1.bf16.msra.mxu0 %v1259
      %1280 = vmatprep.subr.bf16.mxu0 0
      %1281 = vmatpush1.bf16.msra.mxu0 %v1260
      %1282 = vmatprep.subr.bf16.mxu0 0
      %1283 = vmatpush1.bf16.msra.mxu0 0
      %1284 = vmatprep.subr.bf16.mxu0 0
      %1285 = vmatpush1.bf16.msra.mxu0 0
      %1286 = vmatprep.subr.bf16.mxu0 0
      %1287 = vmatpush1.bf16.msra.mxu0 0
      %1288 = vmatprep.subr.bf16.mxu0 0
      %1289 = vmatpush1.bf16.msra.mxu0 0
      %1290 = vmatprep.subr.bf16.mxu0 0
      %1291 = vmatpush1.bf16.msra.mxu0 0
      %1292 = vmatprep.subr.bf16.mxu0 0
      %1293 = vmatpush1.bf16.msra.mxu0 0
      %1294 = vmatprep.subr.bf16.mxu0 0
      %1295 = vmatpush1.bf16.msra.mxu0 0
      %1296 = vmatprep.subr.bf16.mxu0 0
      %1297 = vmatpush1.bf16.msra.mxu0 0
      %1298 = vmatprep.subr.bf16.mxu0 0
      %1299 = vmatpush1.bf16.msra.mxu0 0
      %1300 = vmatprep.subr.bf16.mxu0 0
      %1301 = vmatpush1.bf16.msra.mxu0 0
      %1302 = vmatprep.subr.bf16.mxu0 0
      %1303 = vmatpush1.bf16.msra.mxu0 0
      %1304 = vmatprep.subr.bf16.mxu0 0
      %1305 = vmatpush1.bf16.msra.mxu0 0
      %1306 = vmatprep.mubr.bf16.mxu0 0
      %1307 = vmatmul.mubr.bf16.gmra.mrb[0].mxu0 %v1263
      %v1308 = vpop.f32.mrb[0].mxu0
      %v1309 = vadd.f32 0.0, %v1308
      %v1310 = vpop.f32.mrb[0].mxu0
      %v1311 = vpop.f32.mrb[0].mxu0
      %v1312 = vadd.f32 0.0, %v1311
      %v1313 = vpop.f32.mrb[0].mxu0
      %1314 = vmatprep.mubr.bf16.mxu0 0
      %1315 = vmatmul.mubr.bf16.gmra.mrb[0].mxu0 %v1266
      %v1316 = vpop.f32.mrb[0].mxu0
      %v1317 = vadd.f32 0.0, %v1316
      %v1318 = vpop.f32.mrb[0].mxu0
      %v1319 = vpop.f32.mrb[0].mxu0
      %v1320 = vadd.f32 0.0, %v1319
      %v1321 = vpop.f32.mrb[0].mxu0
      %1322 = vmatprep.mubr.bf16.mxu0 0
      %1323 = vmatmul.mubr.bf16.gmra.mrb[0].mxu0 %v1269
      %v1324 = vpop.f32.mrb[0].mxu0
      %v1325 = vadd.f32 0.0, %v1324
      %v1326 = vpop.f32.mrb[0].mxu0
      %v1327 = vpop.f32.mrb[0].mxu0
      %v1328 = vadd.f32 0.0, %v1327
      %v1329 = vpop.f32.mrb[0].mxu0
      %1330 = vmatprep.mubr.bf16.mxu0 0
      %1331 = vmatmul.mubr.bf16.gmra.mrb[0].mxu0 %v1272
      %v1332 = vpop.f32.mrb[0].mxu0
      %v1333 = vadd.f32 0.0, %v1332
      %v1334 = vpop.f32.mrb[0].mxu0
      %v1335 = vpop.f32.mrb[0].mxu0
      %v1336 = vadd.f32 0.0, %v1335
      %v1337 = vpop.f32.mrb[0].mxu0
      %1338 = vdwg.mxu0
      %v1339 = vpack.c.bf16 %v1312, %v1309
      %v1340 = vpack.c.bf16 %v1320, %v1317
      %v1341 = vpack.c.bf16 %v1328, %v1325
      %v1342 = vpack.c.bf16 %v1336, %v1333
      %v1343 = vld [vmem:[%s3] sm:$0xf]
      %v1344 = vld [vmem:[%s3 + $0x4] sm:$0xf]
      %v1345 = vld [vmem:[%s3 + $0x8] sm:$0xf]
      %v1346 = vld [vmem:[%s3 + $0xc] sm:$0xf]
      %v1347 = vld [vmem:[%s3 + $0x10] sm:$0xf]
      %v1348 = vld [vmem:[%s3 + $0x14] sm:$0xf]
      %v1349 = vld [vmem:[%s3 + $0x18] sm:$0xf]
      %v1350 = vld [vmem:[%s3 + $0x1c] sm:$0xf]
      %v1351 = vld [vmem:[%s3 + $0x20] sm:$0xf]
      %v1352 = vld [vmem:[%s3 + $0x24] sm:$0xf]
      %v1353 = vld [vmem:[%s3 + $0x28] sm:$0xf]
      %v1354 = vld [vmem:[%s3 + $0x2c] sm:$0xf]
      %v1355 = vld [vmem:[%s3 + $0x30] sm:$0xf]
      %v1356 = vld [vmem:[%s3 + $0x34] sm:$0xf]
      %v1357 = vld [vmem:[%s3 + $0x38] sm:$0xf]
      %v1358 = vld [vmem:[%s3 + $0x3c] sm:$0xf]
      %v1359 = vld [vmem:[%s4] sm:$0x1]
      %v1361 = vlaneseq
      %v1362 = vshrl.u32 %v1361, 7
      %v1363 = vsub.s32 0, %v1362
      %v1364 = vrot.slane %v1359, %v1363
      %v1382 = vunpack.c.l.b16 %v1343
      %v1383 = vunpack.c.l.b16 %v1344
      %v1384 = vunpack.c.l.b16 %v1345
      %v1385 = vunpack.c.l.b16 %v1346
      %v1386 = vunpack.c.l.b16 %v1347
      %v1387 = vunpack.c.l.b16 %v1348
      %v1388 = vunpack.c.l.b16 %v1349
      %v1389 = vunpack.c.l.b16 %v1350
      %v1390 = vunpack.c.l.b16 %v1351
      %v1391 = vunpack.c.l.b16 %v1352
      %v1392 = vunpack.c.l.b16 %v1353
      %v1393 = vunpack.c.l.b16 %v1354
      %v1394 = vunpack.c.l.b16 %v1355
      %v1395 = vunpack.c.l.b16 %v1356
      %v1396 = vunpack.c.l.b16 %v1357
      %v1397 = vunpack.c.l.b16 %v1358
      %v1398 = vpack.c.b16 %v1383, %v1382
      %v1399 = vpack.c.b16 %v1385, %v1384
      %v1400 = vpack.c.b16 %v1387, %v1386
      %v1401 = vpack.c.b16 %v1389, %v1388
      %v1402 = vpack.c.b16 %v1391, %v1390
      %v1403 = vpack.c.b16 %v1393, %v1392
      %v1404 = vpack.c.b16 %v1395, %v1394
      %v1405 = vpack.c.b16 %v1397, %v1396
      %1414 = vmatprep.subr.bf16.mxu0 0
      %1415 = vmatpush1.bf16.msra.mxu0 %v1398
      %1416 = vmatprep.subr.bf16.mxu0 0
      %1417 = vmatpush1.bf16.msra.mxu0 %v1399
      %1418 = vmatprep.subr.bf16.mxu0 0
      %1419 = vmatpush1.bf16.msra.mxu0 %v1400
      %1420 = vmatprep.subr.bf16.mxu0 0
      %1421 = vmatpush1.bf16.msra.mxu0 %v1401
      %1422 = vmatprep.subr.bf16.mxu0 0
      %1423 = vmatpush1.bf16.msra.mxu0 %v1402
      %1424 = vmatprep.subr.bf16.mxu0 0
      %1425 = vmatpush1.bf16.msra.mxu0 %v1403
      %1426 = vmatprep.subr.bf16.mxu0 0
      %1427 = vmatpush1.bf16.msra.mxu0 %v1404
      %1428 = vmatprep.subr.bf16.mxu0 0
      %1429 = vmatpush1.bf16.msra.mxu0 %v1405
      %1430 = vmatprep.subr.bf16.mxu0 0
      %1431 = vmatpush1.bf16.msra.mxu0 0
      %1432 = vmatprep.subr.bf16.mxu0 0
      %1433 = vmatpush1.bf16.msra.mxu0 0
      %1434 = vmatprep.subr.bf16.mxu0 0
      %1435 = vmatpush1.bf16.msra.mxu0 0
      %1436 = vmatprep.subr.bf16.mxu0 0
      %1437 = vmatpush1.bf16.msra.mxu0 0
      %1438 = vmatprep.subr.bf16.mxu0 0
      %1439 = vmatpush1.bf16.msra.mxu0 0
      %1440 = vmatprep.subr.bf16.mxu0 0
      %1441 = vmatpush1.bf16.msra.mxu0 0
      %1442 = vmatprep.subr.bf16.mxu0 0
      %1443 = vmatpush1.bf16.msra.mxu0 0
      %1444 = vmatprep.subr.bf16.mxu0 0
      %1445 = vmatpush1.bf16.msra.mxu0 0
      %1446 = vmatprep.mubr.bf16.mxu0 0
      %1447 = vmatmul.mubr.bf16.gmra.mrb[0].mxu0 %v1339
      %v1448 = vpop.f32.mrb[0].mxu0
      %v1449 = vadd.f32 %v1364, %v1448
      %v1450 = vpop.f32.mrb[0].mxu0
      %v1451 = vpop.f32.mrb[0].mxu0
      %v1452 = vadd.f32 %v1364, %v1451
      %v1453 = vpop.f32.mrb[0].mxu0
      %1454 = vmatprep.mubr.bf16.mxu0 0
      %1455 = vmatmul.mubr.bf16.gmra.mrb[0].mxu0 %v1340
      %v1456 = vpop.f32.mrb[0].mxu0
      %v1457 = vadd.f32 %v1364, %v1456
      %v1458 = vpop.f32.mrb[0].mxu0
      %v1459 = vpop.f32.mrb[0].mxu0
      %v1460 = vadd.f32 %v1364, %v1459
      %v1461 = vpop.f32.mrb[0].mxu0
      %1462 = vmatprep.mubr.bf16.mxu0 0
      %1463 = vmatmul.mubr.bf16.gmra.mrb[0].mxu0 %v1341
      %v1464 = vpop.f32.mrb[0].mxu0
      %v1465 = vadd.f32 %v1364, %v1464
      %v1466 = vpop.f32.mrb[0].mxu0
      %v1467 = vpop.f32.mrb[0].mxu0
      %v1468 = vadd.f32 %v1364, %v1467
      %v1469 = vpop.f32.mrb[0].mxu0
      %1470 = vmatprep.mubr.bf16.mxu0 0
      %1471 = vmatmul.mubr.bf16.gmra.mrb[0].mxu0 %v1342
      %v1472 = vpop.f32.mrb[0].mxu0
      %v1473 = vadd.f32 %v1364, %v1472
      %v1474 = vpop.f32.mrb[0].mxu0
      %v1475 = vpop.f32.mrb[0].mxu0
      %v1476 = vadd.f32 %v1364, %v1475
      %v1477 = vpop.f32.mrb[0].mxu0
      %1478 = vdwg.mxu0
      %v1479 = vpack.c.bf16 %v1452, %v1449
      %v1480 = vpack.c.bf16 %v1460, %v1457
      %v1481 = vpack.c.bf16 %v1468, %v1465
      %v1482 = vpack.c.bf16 %v1476, %v1473
      %v1487 = vunpack.c.l.b16 %v1479
      %v1488 = vunpack.c.h.b16 %v1479
      %v1489 = vunpack.c.l.b16 %v1480
      %v1490 = vunpack.c.h.b16 %v1480
      %v1491 = vunpack.c.l.b16 %v1481
      %v1492 = vunpack.c.h.b16 %v1481
      %v1493 = vunpack.c.l.b16 %v1482
      %v1494 = vunpack.c.h.b16 %v1482
      %v1495 = vpack.c.b16 %v1487, %v1487
      %v1496 = vpack.c.b16 %v1488, %v1488
      %v1497 = vpack.c.b16 %v1489, %v1489
      %v1498 = vpack.c.b16 %v1490, %v1490
      %v1499 = vpack.c.b16 %v1491, %v1491
      %v1500 = vpack.c.b16 %v1492, %v1492
      %v1501 = vpack.c.b16 %v1493, %v1493
      %v1502 = vpack.c.b16 %v1494, %v1494
      %vm1511 = vcmask 257024
      %1512 = vst.msk [vmem:[%s249] sm:$0xf] %vm1511, %v1495
      %1513 = vst.msk [vmem:[%s249 + $0x4] sm:$0xf] %vm1511, %v1496
      %1514 = vst.msk [vmem:[%s249 + $0x8] sm:$0xf] %vm1511, %v1497
      %1515 = vst.msk [vmem:[%s249 + $0xc] sm:$0xf] %vm1511, %v1498
      %1516 = vst.msk [vmem:[%s249 + $0x10] sm:$0xf] %vm1511, %v1499
      %1517 = vst.msk [vmem:[%s249 + $0x14] sm:$0xf] %vm1511, %v1500
      %1518 = vst.msk [vmem:[%s249 + $0x18] sm:$0xf] %vm1511, %v1501
      %1519 = vst.msk [vmem:[%s249 + $0x1c] sm:$0xf] %vm1511, %v1502
      %s1520 = smul.u32 %s20, 4
      %s1521 = sadd.s32 %s1520, %s21
      %p1522 = scmp.lt.s32.totalorder %s1521, 7
      %s1523 = scalar_select %p1522, %s1521, 7
      %s1524 = smul.addr %s1523, 8
      %s1525 = smul.addr %s1524, 4
      %s1526 = scalar_lea.vmem %s5, %s1525
      // Predicated region
      $region45: #{tpu_custom_call.1} parent=39 // pred_check
        %p1527 = pneg %p160
      $region46: #{tpu_custom_call.1} parent=39 // pred_check_branch
        %1529 = sbr.rel (%p1527) target = $region48
      $region47: #{tpu_custom_call.1} parent=39 // pred_region
        %s1530 = smul.u32 %s20, 4
        %s1531 = sadd.s32 %s1530, %s21
      $region48: #{tpu_custom_call.1} parent=39 // pred_fallthru
        _
    $region40: #{tpu_custom_call.1} parent=5 // pred_fallthru
      _
    %p1532 = scmp.le.s32.totalorder 2, %s11
    // Predicated region
    $region49: #{tpu_custom_call.1} parent=5 // pred_check
      %p1533 = pneg %p1532
    $region50: #{tpu_custom_call.1} parent=5 // pred_check_branch
      %1535 = sbr.rel (%p1533) target = $region52
    $region51: #{tpu_custom_call.1} parent=5 // pred_region
      %s1536 = ssub.s32 %s11, 2
      // Predicated region
      $region53: #{tpu_custom_call.1} parent=51 // pred_check
        %p1537 = pneg %p166
      $region54: #{tpu_custom_call.1} parent=51 // pred_check_branch
        %1539 = sbr.rel (%p1537) target = $region56
      $region55: #{tpu_custom_call.1} parent=51 // pred_region
        %s1540 = smul.u32 %s22, 4
        %s1541 = sadd.s32 %s1540, %s23
        %p1542 = scmp.lt.s32.totalorder %s1541, 7
        %s1543 = scalar_select %p1542, %s1541, 7
        %s1544 = smul.addr %s1543, 8
        %s1545 = smul.addr %s1544, 4
        %s1546 = scalar_lea.vmem %s5, %s1545
      $region56: #{tpu_custom_call.1} parent=51 // pred_fallthru
        _
    $region52: #{tpu_custom_call.1} parent=5 // pred_fallthru
      _
  $region6: #{tpu_custom_call.1} parent=0 // loop_footer
    %s15 = sadd.s32 1, %s11
  $region7: #{tpu_custom_call.1} parent=0 // loop_footer_branch
    %10 = sbr.rel target = $region3
  $region8: #{tpu_custom_call.1} parent=0 // loop_exit
    _

</llo_original>
